<compile_context>
chip_gen: v5e
topology: v5e:2x2
jax: 0.10.0
libtpu: 0.0.40
codegen_flags: <defaults>
</compile_context>

<pallas_src>
import functools

import jax
import jax.numpy as jnp
from jax import lax
from jax.experimental import pallas as pl
from jax.experimental.pallas import tpu as pltpu


# ---------------------------------------------------------------------------
# Parameter slab packing (wrapper side) + shared static layout
# ---------------------------------------------------------------------------
def _round8(n):
    return ((n + 7) // 8) * 8


def _round128(n):
    return ((n + 127) // 128) * 128


def _pad_gate_cols(w, Hs, direction):
    """w: (rows, 3*Hs) with column blocks [r|z|n]  ->  (rows, 6*Hs) in the fused layout
    [r_f|r_b|z_f|z_b|n_f|n_b]: this direction's values, zeros in the other direction's
    lane positions (so the block-diagonal recurrence math never cross-contaminates)."""
    rows = w.shape[0]
    out = jnp.zeros((rows, 6 * Hs), jnp.float32)
    off = 0 if direction == "f" else Hs
    for g in range(3):
        out = out.at[:, 2 * g * Hs + off:2 * g * Hs + off + Hs].set(
            w[:, g * Hs:(g + 1) * Hs].astype(jnp.float32))
    return out


def _slab_layout(Din, Hs, G, Bp):
    """Row layout of the packed parameter slab. Every block starts 8-row aligned."""
    layout = {}
    row = 0

    def add(name, nrows, ncols):
        nonlocal row
        layout[name] = (row, nrows, ncols)
        row += _round8(nrows)

    add("w_if",   Din,     6 * Hs)   # fwd input weights, padded gate layout
    add("w_ib",   Din,     6 * Hs)   # bwd input weights, padded gate layout
    add("b_if",   1,       6 * Hs)
    add("b_ib",   1,       6 * Hs)
    add("w_hh",   2 * Hs,  6 * Hs)   # block-diagonal [w_hh_f ; w_hh_b]
    add("b_hh",   2 * Bp,  6 * Hs)   # row-expanded (fwd rows / bwd rows), no dead-lane leak
    add("sent_w", 2 * Hs,  2 * Hs)
    add("sent_b", 1,       2 * Hs)
    add("ctx",    1,       2 * Hs)   # context_weight^T
    add("lin_w",  2 * Hs,  G)        # linear.weight^T
    add("lin_b",  1,       G)

    width = _round128(max(6 * Hs, 2 * Hs, G))   # lane-dense slab
    return layout, row, width


def _pack_params(params, Din, Hs, G, Bp):
    (w_ih_f, w_hh_f, b_ih_f, b_hh_f,
     w_ih_b, w_hh_b, b_ih_b, b_hh_b,
     sent_w, sent_b, ctx_w, lin_w, lin_b) = params
    layout, nrows, width = _slab_layout(Din, Hs, G, Bp)

    w_hh_blk = jnp.concatenate([_pad_gate_cols(w_hh_f.T, Hs, "f"),
                                _pad_gate_cols(w_hh_b.T, Hs, "b")], axis=0)   # (2Hs, 6Hs)
    b_hh_pad = jnp.concatenate(
        [jnp.tile(_pad_gate_cols(b_hh_f.reshape(1, 3 * Hs), Hs, "f"), (Bp, 1)),
         jnp.tile(_pad_gate_cols(b_hh_b.reshape(1, 3 * Hs), Hs, "b"), (Bp, 1))],
        axis=0)                                                                # (2Bp, 6Hs)

    entries = {
        "w_if":   _pad_gate_cols(w_ih_f.T, Hs, "f"),
        "w_ib":   _pad_gate_cols(w_ih_b.T, Hs, "b"),
        "b_if":   _pad_gate_cols(b_ih_f.reshape(1, 3 * Hs), Hs, "f"),
        "b_ib":   _pad_gate_cols(b_ih_b.reshape(1, 3 * Hs), Hs, "b"),
        "w_hh":   w_hh_blk,
        "b_hh":   b_hh_pad,
        "sent_w": sent_w,
        "sent_b": sent_b.reshape(1, 2 * Hs),
        "ctx":    ctx_w.reshape(1, 2 * Hs),
        "lin_w":  lin_w.T,
        "lin_b":  lin_b.reshape(1, G),
    }
    slab = jnp.zeros((nrows, width), jnp.float32)
    for name, arr in entries.items():
        r0, nr, nc = layout[name]
        slab = slab.at[r0:r0 + nr, 0:nc].set(arr.astype(jnp.float32))
    return slab, layout


# ---------------------------------------------------------------------------
# Pallas kernel
# ---------------------------------------------------------------------------
def _line_att_kernel(x_ref, h0_ref, slab_ref,            # inputs
                     out_ref, hcat_ref,                  # outputs
                     gi_f_ref, gi_b_ref, hseq_ref,       # VMEM scratch
                     *, T, Bp, Hs, G, layout):
    H2, H4 = 2 * Hs, 4 * Hs

    def getp(name):
        r0, nr, nc = layout[name]
        return slab_ref[r0:r0 + nr, 0:nc]                # static-offset slab slice

    # ---- GRU input projection: all T steps, per direction, OFF the serial chain ----
    # Each direction writes its own scratch in the padded [r_f|r_b|z_f|z_b|n_f|n_b]
    # gate layout (its lanes filled, the other direction's lanes exactly zero).
    x = x_ref[...]
    gi_f_ref[...] = (jnp.dot(x, getp("w_if"), preferred_element_type=jnp.float32)
                     + getp("b_if"))
    gi_b_ref[...] = (jnp.dot(x, getp("w_ib"), preferred_element_type=jnp.float32)
                     + getp("b_ib"))

    hseq_ref[...] = jnp.zeros_like(hseq_ref)             # merged f_out accumulator

    w_hh = getp("w_hh")                                  # (2Hs, 6Hs) block-diagonal
    b_hh = getp("b_hh")                                  # (2Bp, 6Hs) row-expanded bias

    # ---- fused bidirectional recurrence: ONE matmul/sigmoid/tanh per step covers
    # fwd time t=i (rows [0:Bp]) and bwd time t=T-1-i (rows [Bp:2Bp]).
    # Carry h is (2Bp, 2Hs); its dead lanes stay exactly 0 by construction.
    def step(i, h):
        row_f = pl.multiple_of(i * Bp, Bp)
        row_b = pl.multiple_of((T - 1 - i) * Bp, Bp)
        gi = jnp.concatenate([gi_f_ref[pl.ds(row_f, Bp), :],
                              gi_b_ref[pl.ds(row_b, Bp), :]], axis=0)   # (2Bp, 6Hs)
        gh = jnp.dot(h, w_hh, preferred_element_type=jnp.float32) + b_hh
        rz = jax.nn.sigmoid(gi[:, :H4] + gh[:, :H4])     # r,z of BOTH directions at once
        r, z = rz[:, :H2], rz[:, H2:]
        n = jnp.tanh(gi[:, H4:] + r * gh[:, H4:])        # n of both directions
        h = (1.0 - z) * n + z * h
        # Merged f_out slab: the fwd half carries zeros in the bwd lanes (and vice
        # versa), so accumulating both halves into the same time block is exact.
        hseq_ref[pl.ds(row_f, Bp), :] += h[:Bp, :]
        hseq_ref[pl.ds(row_b, Bp), :] += h[Bp:, :]
        return h

    h_fin = lax.fori_loop(0, T, step, h0_ref[...], unroll=min(T, 8))
    hcat_ref[...] = h_fin[:Bp, :] + h_fin[Bp:, :]        # [h_f_final | h_b_final]

    # ---- attention over time + pooling, all on the merged (T*Bp, 2Hs) slab ----
    hseq = hseq_ref[...]
    u = jnp.tanh(jnp.dot(hseq, getp("sent_w"), preferred_element_type=jnp.float32)
                 + getp("sent_b"))                       # (T*Bp, 2Hs)
    # context score: VPU broadcast-multiply + lane reduce (no 1-column MXU matmul)
    uc = u * getp("ctx")
    s3 = jnp.tanh(jnp.sum(uc.reshape(T, Bp, H2), axis=2, keepdims=True))   # (T, Bp, 1)
    # s is a tanh output, bounded in (-1,1): max-free softmax is numerically safe
    e3 = jnp.exp(s3)                                     # (T, Bp, 1)
    h3 = hseq.reshape(T, Bp, H2)                         # (T, Bp, 2Hs)
    z_den = jnp.sum(e3, axis=0)                          # (Bp, 1)
    num = jnp.sum(h3 * e3, axis=0)                       # (Bp, 2Hs)  VPU segmented reduce
    pooled = num * pl.reciprocal(z_den, approx=True)     # EUP approximate reciprocal

    out_ref[...] = (jnp.dot(pooled, getp("lin_w"), preferred_element_type=jnp.float32)
                    + getp("lin_b"))


# ---------------------------------------------------------------------------
# Wrapper
# ---------------------------------------------------------------------------
def line_att_encoder_pallas(x, h0, params, *, num_classes):
    """x: (T, B, 2*word_hidden) f32, h0: (2, B, sent_hidden) f32 -> (logits, h_out)."""
    T, B, Din = x.shape
    Hs = h0.shape[2]
    G = num_classes
    Bp = _round8(B)                       # sublane-padded batch

    slab, layout = _pack_params(params, Din, Hs, G, Bp)

    # Pad batch to Bp so every per-step access is an aligned full-tile load/store.
    x_p = jnp.zeros((T, Bp, Din), jnp.float32).at[:, :B, :].set(x.astype(jnp.float32))
    x2d = x_p.reshape(T * Bp, Din)
    # Row-stacked, lane-padded initial hidden state: fwd in rows[0:Bp] lanes[0:Hs],
    # bwd in rows[Bp:2Bp] lanes[Hs:2Hs], zeros elsewhere (the "dead" lanes).
    h0p = jnp.zeros((2 * Bp, 2 * Hs), jnp.float32)
    h0p = h0p.at[:B, :Hs].set(h0[0].astype(jnp.float32))
    h0p = h0p.at[Bp:Bp + B, Hs:].set(h0[1].astype(jnp.float32))

    kern = functools.partial(_line_att_kernel, T=T, Bp=Bp, Hs=Hs, G=G, layout=layout)
    vmem = pl.BlockSpec(memory_space=pltpu.MemorySpace.VMEM)

    # Explicit VMEM budget (v7x: 64 MiB physical, 32 MiB default scoped limit).
    vmem_bytes = 4 * (x2d.size + h0p.size + slab.size
                      + 2 * T * Bp * 6 * Hs + T * Bp * 2 * Hs
                      + Bp * G + Bp * 2 * Hs)
    vmem_limit = int(min(max(4 * vmem_bytes, 1 << 20), 64 << 20))

    logits_p, hcat = pl.pallas_call(
        kern,
        out_shape=(jax.ShapeDtypeStruct((Bp, G), jnp.float32),
                   jax.ShapeDtypeStruct((Bp, 2 * Hs), jnp.float32)),
        in_specs=[vmem, vmem, vmem],
        out_specs=(vmem, vmem),
        scratch_shapes=[pltpu.VMEM((T * Bp, 6 * Hs), jnp.float32),   # gi fwd (padded gates)
                        pltpu.VMEM((T * Bp, 6 * Hs), jnp.float32),   # gi bwd (padded gates)
                        pltpu.VMEM((T * Bp, 2 * Hs), jnp.float32)],  # merged f_out slab
        compiler_params=pltpu.CompilerParams(vmem_limit_bytes=vmem_limit),
    )(x2d, h0p, slab)

    logits = logits_p[:B]
    h_out = jnp.stack([hcat[:B, :Hs], hcat[:B, Hs:]], axis=0)
    return logits, h_out


# ---------------------------------------------------------------------------
# Pure-JAX reference (mirrors the PyTorch module)
# ---------------------------------------------------------------------------
def _ref_forward(x, h0, params):
    (w_ih_f, w_hh_f, b_ih_f, b_hh_f,
     w_ih_b, w_hh_b, b_ih_b, b_hh_b,
     sent_w, sent_b, ctx_w, lin_w, lin_b) = params
    T, B, _ = x.shape
    Hs = w_hh_f.shape[1]

    def cell(x_t, h, w_ih, w_hh, b_ih, b_hh):
        gi = x_t @ w_ih.T + b_ih
        gh = h @ w_hh.T + b_hh
        r = jax.nn.sigmoid(gi[:, :Hs] + gh[:, :Hs])
        z = jax.nn.sigmoid(gi[:, Hs:2 * Hs] + gh[:, Hs:2 * Hs])
        n = jnp.tanh(gi[:, 2 * Hs:] + r * gh[:, 2 * Hs:])
        return (1.0 - z) * n + z * h

    h = h0[0]
    fwd = []
    for t in range(T):
        h = cell(x[t], h, w_ih_f, w_hh_f, b_ih_f, b_hh_f)
        fwd.append(h)
    h_f = h
    h = h0[1]
    bwd = [None] * T
    for t in range(T - 1, -1, -1):
        h = cell(x[t], h, w_ih_b, w_hh_b, b_ih_b, b_hh_b)
        bwd[t] = h
    h_b = h
    f_out = jnp.stack([jnp.concatenate([fwd[t], bwd[t]], axis=1) for t in range(T)])  # (T,B,2Hs)

    u = jnp.tanh(jnp.einsum("tbh,hk->tbk", f_out, sent_w) + sent_b)     # matrix_multi(W, b)
    s = jnp.tanh(jnp.einsum("tbh,hk->tbk", u, ctx_w))[..., 0]           # matrix_multi(ctx) -> (T,B)
    alpha = jax.nn.softmax(s.T, axis=1)                                 # softmax over time, (B,T)
    pooled = jnp.sum(f_out * alpha.T[:, :, None], axis=0)               # element_multi -> (B,2Hs)
    logits = pooled @ lin_w.T + lin_b
    h_out = jnp.stack([h_f, h_b], axis=0)
    return logits, h_out


# ---------------------------------------------------------------------------
if __name__ == "__main__":
    key = jax.random.PRNGKey(0)
    T, B = 8, 2                 # sequence length (lines), batch
    Hw, Hs, G = 8, 8, 4         # word_hidden_size, sent_hidden_size, num_classes
    Din = 2 * Hw

    keys = iter(jax.random.split(key, 20))

    def norm(shape, scale=0.05):
        return scale * jax.random.normal(next(keys), shape, jnp.float32)

    # GRU params in PyTorch layout (gates ordered [r, z, n]); module init std = 0.05
    w_ih_f = norm((3 * Hs, Din)); w_hh_f = norm((3 * Hs, Hs))
    b_ih_f = norm((3 * Hs,));     b_hh_f = norm((3 * Hs,))
    w_ih_b = norm((3 * Hs, Din)); w_hh_b = norm((3 * Hs, Hs))
    b_ih_b = norm((3 * Hs,));     b_hh_b = norm((3 * Hs,))
    sent_w = norm((2 * Hs, 2 * Hs)); sent_b = norm((1, 2 * Hs))
    ctx_w = norm((2 * Hs, 1))
    lin_w = norm((G, 2 * Hs)); lin_b = norm((G,))

    params = (w_ih_f, w_hh_f, b_ih_f, b_hh_f,
              w_ih_b, w_hh_b, b_ih_b, b_hh_b,
              sent_w, sent_b, ctx_w, lin_w, lin_b)

    x = norm((T, B, Din), 1.0)      # GRU input (seq-first, PyTorch nn.GRU convention)
    h0 = norm((2, B, Hs), 0.1)      # initial bidirectional hidden state

    logits, h_out = line_att_encoder_pallas(x, h0, params, num_classes=G)
    logits = jax.block_until_ready(logits)
    h_out = jax.block_until_ready(h_out)

    ref_logits, ref_h = _ref_forward(x, h0, params)
    assert logits.shape == (B, G) and h_out.shape == (2, B, Hs)
    # Tolerance slightly above f32-exact to admit the EUP approximate reciprocal.
    assert jnp.allclose(logits, ref_logits, atol=2e-4, rtol=2e-4), (logits, ref_logits)
    assert jnp.allclose(h_out, ref_h, atol=2e-4, rtol=2e-4), (h_out, ref_h)
    print("KERNEL_OK")
</pallas_src>

<mosaic_0001>
module attributes {stable_mosaic.version = 11 : i64} {
  func.func @_line_att_kernel(%arg0: memref<64x16xf32, #tpu.memory_space<vmem>>, %arg1: memref<16x16xf32, #tpu.memory_space<vmem>>, %arg2: memref<136x128xf32, #tpu.memory_space<vmem>>, %arg3: memref<8x4xf32, #tpu.memory_space<vmem>>, %arg4: memref<8x16xf32, #tpu.memory_space<vmem>>, %arg5: memref<64x48xf32, #tpu.memory_space<vmem>>, %arg6: memref<64x48xf32, #tpu.memory_space<vmem>>, %arg7: memref<64x16xf32, #tpu.memory_space<vmem>>) attributes {dimension_semantics = [], scalar_prefetch = 0 : i64, scratch_operands = 3 : i64, tpu.core_type = #tpu.core_type<tc>} {
    %c0 = arith.constant 0 : index
    %c0_0 = arith.constant 0 : index
    %0 = vector.load %arg0[%c0, %c0_0] : memref<64x16xf32, #tpu.memory_space<vmem>>, vector<64x16xf32>
    %c0_1 = arith.constant 0 : index
    %c0_2 = arith.constant 0 : index
    %1 = vector.load %arg2[%c0_1, %c0_2] : memref<136x128xf32, #tpu.memory_space<vmem>>, vector<16x48xf32>
    %cst = arith.constant dense<0.000000e+00> : vector<64x48xf32>
    %2 = tpu.matmul %0, %1, %cst {dimension_numbers = #tpu.dot_dimension_numbers<[1], [0], [0], [1], [0, 0, 1, 1], [], []>} : vector<64x16xf32>, vector<16x48xf32>, vector<64x48xf32> -> vector<64x48xf32>
    %c32 = arith.constant 32 : index
    %c0_3 = arith.constant 0 : index
    %3 = vector.load %arg2[%c32, %c0_3] : memref<136x128xf32, #tpu.memory_space<vmem>>, vector<1x48xf32>
    %4 = vector.broadcast %3 : vector<1x48xf32> to vector<64x48xf32>
    %5 = arith.addf %2, %4 : vector<64x48xf32>
    %c0_4 = arith.constant 0 : index
    %c0_5 = arith.constant 0 : index
    %6 = vector.load %arg5[%c0_4, %c0_5] : memref<64x48xf32, #tpu.memory_space<vmem>>, vector<64x48xf32>
    tpu.vector_store %arg5[%c0_4, %c0_5], %5 {strides = array<i32>} : memref<64x48xf32, #tpu.memory_space<vmem>>, vector<64x48xf32>,
    %c16 = arith.constant 16 : index
    %c0_6 = arith.constant 0 : index
    %7 = vector.load %arg2[%c16, %c0_6] : memref<136x128xf32, #tpu.memory_space<vmem>>, vector<16x48xf32>
    %cst_7 = arith.constant dense<0.000000e+00> : vector<64x48xf32>
    %8 = tpu.matmul %0, %7, %cst_7 {dimension_numbers = #tpu.dot_dimension_numbers<[1], [0], [0], [1], [0, 0, 1, 1], [], []>} : vector<64x16xf32>, vector<16x48xf32>, vector<64x48xf32> -> vector<64x48xf32>
    %c40 = arith.constant 40 : index
    %c0_8 = arith.constant 0 : index
    %9 = vector.load %arg2[%c40, %c0_8] : memref<136x128xf32, #tpu.memory_space<vmem>>, vector<1x48xf32>
    %10 = vector.broadcast %9 : vector<1x48xf32> to vector<64x48xf32>
    %11 = arith.addf %8, %10 : vector<64x48xf32>
    %c0_9 = arith.constant 0 : index
    %c0_10 = arith.constant 0 : index
    %12 = vector.load %arg6[%c0_9, %c0_10] : memref<64x48xf32, #tpu.memory_space<vmem>>, vector<64x48xf32>
    tpu.vector_store %arg6[%c0_9, %c0_10], %11 {strides = array<i32>} : memref<64x48xf32, #tpu.memory_space<vmem>>, vector<64x48xf32>,
    %cst_11 = arith.constant 0.000000e+00 : f32
    %13 = vector.broadcast %cst_11 : f32 to vector<64x16xf32>
    %c0_12 = arith.constant 0 : index
    %c0_13 = arith.constant 0 : index
    %14 = vector.load %arg7[%c0_12, %c0_13] : memref<64x16xf32, #tpu.memory_space<vmem>>, vector<64x16xf32>
    tpu.vector_store %arg7[%c0_12, %c0_13], %13 {strides = array<i32>} : memref<64x16xf32, #tpu.memory_space<vmem>>, vector<64x16xf32>,
    %c48 = arith.constant 48 : index
    %c0_14 = arith.constant 0 : index
    %15 = vector.load %arg2[%c48, %c0_14] : memref<136x128xf32, #tpu.memory_space<vmem>>, vector<16x48xf32>
    %c64 = arith.constant 64 : index
    %c0_15 = arith.constant 0 : index
    %16 = vector.load %arg2[%c64, %c0_15] : memref<136x128xf32, #tpu.memory_space<vmem>>, vector<16x48xf32>
    %c0_16 = arith.constant 0 : index
    %c0_17 = arith.constant 0 : index
    %17 = vector.load %arg1[%c0_16, %c0_17] : memref<16x16xf32, #tpu.memory_space<vmem>>, vector<16x16xf32>
    %c0_i32 = arith.constant 0 : i32
    %c8_i32 = arith.constant 8 : i32
    %18 = arith.muli %c0_i32, %c8_i32 : i32
    %19 = tpu.assume_multiple %18, 8 : i32
    %c7_i32 = arith.constant 7 : i32
    %20 = arith.subi %c7_i32, %c0_i32 : i32
    %c8_i32_18 = arith.constant 8 : i32
    %21 = arith.muli %20, %c8_i32_18 : i32
    %22 = tpu.assume_multiple %21, 8 : i32
    %23 = arith.index_cast %19 : i32 to index
    %c0_19 = arith.constant 0 : index
    %24 = vector.load %arg5[%23, %c0_19] : memref<64x48xf32, #tpu.memory_space<vmem>>, vector<8x48xf32>
    %25 = arith.index_cast %22 : i32 to index
    %c0_20 = arith.constant 0 : index
    %26 = vector.load %arg6[%25, %c0_20] : memref<64x48xf32, #tpu.memory_space<vmem>>, vector<8x48xf32>
    %27 = tpu.concatenate %24, %26 in 0 : vector<8x48xf32>, vector<8x48xf32> -> vector<16x48xf32>
    %cst_21 = arith.constant dense<0.000000e+00> : vector<16x48xf32>
    %28 = tpu.matmul %17, %15, %cst_21 {dimension_numbers = #tpu.dot_dimension_numbers<[1], [0], [0], [1], [0, 0, 1, 1], [], []>} : vector<16x16xf32>, vector<16x48xf32>, vector<16x48xf32> -> vector<16x48xf32>
    %29 = arith.addf %28, %16 : vector<16x48xf32>
    %30 = vector.extract_strided_slice %27 {offsets = [0, 0], sizes = [16, 32], strides = [1, 1]} : vector<16x48xf32> to vector<16x32xf32>
    %31 = vector.extract_strided_slice %29 {offsets = [0, 0], sizes = [16, 32], strides = [1, 1]} : vector<16x48xf32> to vector<16x32xf32>
    %32 = arith.addf %30, %31 : vector<16x32xf32>
    %33 = arith.negf %32 : vector<16x32xf32>
    %34 = math.exp %33 : vector<16x32xf32>
    %cst_22 = arith.constant 1.000000e+00 : f32
    %35 = vector.broadcast %cst_22 : f32 to vector<16x32xf32>
    %36 = arith.addf %35, %34 : vector<16x32xf32>
    %37 = arith.divf %35, %36 : vector<16x32xf32>
    %38 = vector.extract_strided_slice %37 {offsets = [0, 0], sizes = [16, 16], strides = [1, 1]} : vector<16x32xf32> to vector<16x16xf32>
    %39 = vector.extract_strided_slice %37 {offsets = [0, 16], sizes = [16, 16], strides = [1, 1]} : vector<16x32xf32> to vector<16x16xf32>
    %40 = vector.extract_strided_slice %27 {offsets = [0, 32], sizes = [16, 16], strides = [1, 1]} : vector<16x48xf32> to vector<16x16xf32>
    %41 = vector.extract_strided_slice %29 {offsets = [0, 32], sizes = [16, 16], strides = [1, 1]} : vector<16x48xf32> to vector<16x16xf32>
    %42 = arith.mulf %38, %41 : vector<16x16xf32>
    %43 = arith.addf %40, %42 : vector<16x16xf32>
    %44 = math.tanh %43 : vector<16x16xf32>
    %cst_23 = arith.constant 1.000000e+00 : f32
    %45 = vector.broadcast %cst_23 : f32 to vector<16x16xf32>
    %46 = arith.subf %45, %39 : vector<16x16xf32>
    %47 = arith.mulf %46, %44 : vector<16x16xf32>
    %48 = arith.mulf %39, %17 : vector<16x16xf32>
    %49 = arith.addf %47, %48 : vector<16x16xf32>
    %50 = arith.index_cast %19 : i32 to index
    %c0_24 = arith.constant 0 : index
    %51 = vector.load %arg7[%50, %c0_24] : memref<64x16xf32, #tpu.memory_space<vmem>>, vector<8x16xf32>
    %52 = vector.extract_strided_slice %49 {offsets = [0, 0], sizes = [8, 16], strides = [1, 1]} : vector<16x16xf32> to vector<8x16xf32>
    %53 = arith.addf %51, %52 : vector<8x16xf32>
    %54 = arith.index_cast %19 : i32 to index
    %c0_25 = arith.constant 0 : index
    %55 = vector.load %arg7[%54, %c0_25] : memref<64x16xf32, #tpu.memory_space<vmem>>, vector<8x16xf32>
    tpu.vector_store %arg7[%54, %c0_25], %53 {strides = array<i32>} : memref<64x16xf32, #tpu.memory_space<vmem>>, vector<8x16xf32>,
    %56 = arith.index_cast %22 : i32 to index
    %c0_26 = arith.constant 0 : index
    %57 = vector.load %arg7[%56, %c0_26] : memref<64x16xf32, #tpu.memory_space<vmem>>, vector<8x16xf32>
    %58 = vector.extract_strided_slice %49 {offsets = [8, 0], sizes = [8, 16], strides = [1, 1]} : vector<16x16xf32> to vector<8x16xf32>
    %59 = arith.addf %57, %58 : vector<8x16xf32>
    %60 = arith.index_cast %22 : i32 to index
    %c0_27 = arith.constant 0 : index
    %61 = vector.load %arg7[%60, %c0_27] : memref<64x16xf32, #tpu.memory_space<vmem>>, vector<8x16xf32>
    tpu.vector_store %arg7[%60, %c0_27], %59 {strides = array<i32>} : memref<64x16xf32, #tpu.memory_space<vmem>>, vector<8x16xf32>,
    %c1_i32 = arith.constant 1 : i32
    %c8_i32_28 = arith.constant 8 : i32
    %62 = arith.muli %c1_i32, %c8_i32_28 : i32
    %63 = tpu.assume_multiple %62, 8 : i32
    %c7_i32_29 = arith.constant 7 : i32
    %64 = arith.subi %c7_i32_29, %c1_i32 : i32
    %c8_i32_30 = arith.constant 8 : i32
    %65 = arith.muli %64, %c8_i32_30 : i32
    %66 = tpu.assume_multiple %65, 8 : i32
    %67 = arith.index_cast %63 : i32 to index
    %c0_31 = arith.constant 0 : index
    %68 = vector.load %arg5[%67, %c0_31] : memref<64x48xf32, #tpu.memory_space<vmem>>, vector<8x48xf32>
    %69 = arith.index_cast %66 : i32 to index
    %c0_32 = arith.constant 0 : index
    %70 = vector.load %arg6[%69, %c0_32] : memref<64x48xf32, #tpu.memory_space<vmem>>, vector<8x48xf32>
    %71 = tpu.concatenate %68, %70 in 0 : vector<8x48xf32>, vector<8x48xf32> -> vector<16x48xf32>
    %cst_33 = arith.constant dense<0.000000e+00> : vector<16x48xf32>
    %72 = tpu.matmul %49, %15, %cst_33 {dimension_numbers = #tpu.dot_dimension_numbers<[1], [0], [0], [1], [0, 0, 1, 1], [], []>} : vector<16x16xf32>, vector<16x48xf32>, vector<16x48xf32> -> vector<16x48xf32>
    %73 = arith.addf %72, %16 : vector<16x48xf32>
    %74 = vector.extract_strided_slice %71 {offsets = [0, 0], sizes = [16, 32], strides = [1, 1]} : vector<16x48xf32> to vector<16x32xf32>
    %75 = vector.extract_strided_slice %73 {offsets = [0, 0], sizes = [16, 32], strides = [1, 1]} : vector<16x48xf32> to vector<16x32xf32>
    %76 = arith.addf %74, %75 : vector<16x32xf32>
    %77 = arith.negf %76 : vector<16x32xf32>
    %78 = math.exp %77 : vector<16x32xf32>
    %cst_34 = arith.constant 1.000000e+00 : f32
    %79 = vector.broadcast %cst_34 : f32 to vector<16x32xf32>
    %80 = arith.addf %79, %78 : vector<16x32xf32>
    %81 = arith.divf %79, %80 : vector<16x32xf32>
    %82 = vector.extract_strided_slice %81 {offsets = [0, 0], sizes = [16, 16], strides = [1, 1]} : vector<16x32xf32> to vector<16x16xf32>
    %83 = vector.extract_strided_slice %81 {offsets = [0, 16], sizes = [16, 16], strides = [1, 1]} : vector<16x32xf32> to vector<16x16xf32>
    %84 = vector.extract_strided_slice %71 {offsets = [0, 32], sizes = [16, 16], strides = [1, 1]} : vector<16x48xf32> to vector<16x16xf32>
    %85 = vector.extract_strided_slice %73 {offsets = [0, 32], sizes = [16, 16], strides = [1, 1]} : vector<16x48xf32> to vector<16x16xf32>
    %86 = arith.mulf %82, %85 : vector<16x16xf32>
    %87 = arith.addf %84, %86 : vector<16x16xf32>
    %88 = math.tanh %87 : vector<16x16xf32>
    %cst_35 = arith.constant 1.000000e+00 : f32
    %89 = vector.broadcast %cst_35 : f32 to vector<16x16xf32>
    %90 = arith.subf %89, %83 : vector<16x16xf32>
    %91 = arith.mulf %90, %88 : vector<16x16xf32>
    %92 = arith.mulf %83, %49 : vector<16x16xf32>
    %93 = arith.addf %91, %92 : vector<16x16xf32>
    %94 = arith.index_cast %63 : i32 to index
    %c0_36 = arith.constant 0 : index
    %95 = vector.load %arg7[%94, %c0_36] : memref<64x16xf32, #tpu.memory_space<vmem>>, vector<8x16xf32>
    %96 = vector.extract_strided_slice %93 {offsets = [0, 0], sizes = [8, 16], strides = [1, 1]} : vector<16x16xf32> to vector<8x16xf32>
    %97 = arith.addf %95, %96 : vector<8x16xf32>
    %98 = arith.index_cast %63 : i32 to index
    %c0_37 = arith.constant 0 : index
    %99 = vector.load %arg7[%98, %c0_37] : memref<64x16xf32, #tpu.memory_space<vmem>>, vector<8x16xf32>
    tpu.vector_store %arg7[%98, %c0_37], %97 {strides = array<i32>} : memref<64x16xf32, #tpu.memory_space<vmem>>, vector<8x16xf32>,
    %100 = arith.index_cast %66 : i32 to index
    %c0_38 = arith.constant 0 : index
    %101 = vector.load %arg7[%100, %c0_38] : memref<64x16xf32, #tpu.memory_space<vmem>>, vector<8x16xf32>
    %102 = vector.extract_strided_slice %93 {offsets = [8, 0], sizes = [8, 16], strides = [1, 1]} : vector<16x16xf32> to vector<8x16xf32>
    %103 = arith.addf %101, %102 : vector<8x16xf32>
    %104 = arith.index_cast %66 : i32 to index
    %c0_39 = arith.constant 0 : index
    %105 = vector.load %arg7[%104, %c0_39] : memref<64x16xf32, #tpu.memory_space<vmem>>, vector<8x16xf32>
    tpu.vector_store %arg7[%104, %c0_39], %103 {strides = array<i32>} : memref<64x16xf32, #tpu.memory_space<vmem>>, vector<8x16xf32>,
    %c2_i32 = arith.constant 2 : i32
    %c8_i32_40 = arith.constant 8 : i32
    %106 = arith.muli %c2_i32, %c8_i32_40 : i32
    %107 = tpu.assume_multiple %106, 8 : i32
    %c7_i32_41 = arith.constant 7 : i32
    %108 = arith.subi %c7_i32_41, %c2_i32 : i32
    %c8_i32_42 = arith.constant 8 : i32
    %109 = arith.muli %108, %c8_i32_42 : i32
    %110 = tpu.assume_multiple %109, 8 : i32
    %111 = arith.index_cast %107 : i32 to index
    %c0_43 = arith.constant 0 : index
    %112 = vector.load %arg5[%111, %c0_43] : memref<64x48xf32, #tpu.memory_space<vmem>>, vector<8x48xf32>
    %113 = arith.index_cast %110 : i32 to index
    %c0_44 = arith.constant 0 : index
    %114 = vector.load %arg6[%113, %c0_44] : memref<64x48xf32, #tpu.memory_space<vmem>>, vector<8x48xf32>
    %115 = tpu.concatenate %112, %114 in 0 : vector<8x48xf32>, vector<8x48xf32> -> vector<16x48xf32>
    %cst_45 = arith.constant dense<0.000000e+00> : vector<16x48xf32>
    %116 = tpu.matmul %93, %15, %cst_45 {dimension_numbers = #tpu.dot_dimension_numbers<[1], [0], [0], [1], [0, 0, 1, 1], [], []>} : vector<16x16xf32>, vector<16x48xf32>, vector<16x48xf32> -> vector<16x48xf32>
    %117 = arith.addf %116, %16 : vector<16x48xf32>
    %118 = vector.extract_strided_slice %115 {offsets = [0, 0], sizes = [16, 32], strides = [1, 1]} : vector<16x48xf32> to vector<16x32xf32>
    %119 = vector.extract_strided_slice %117 {offsets = [0, 0], sizes = [16, 32], strides = [1, 1]} : vector<16x48xf32> to vector<16x32xf32>
    %120 = arith.addf %118, %119 : vector<16x32xf32>
    %121 = arith.negf %120 : vector<16x32xf32>
    %122 = math.exp %121 : vector<16x32xf32>
    %cst_46 = arith.constant 1.000000e+00 : f32
    %123 = vector.broadcast %cst_46 : f32 to vector<16x32xf32>
    %124 = arith.addf %123, %122 : vector<16x32xf32>
    %125 = arith.divf %123, %124 : vector<16x32xf32>
    %126 = vector.extract_strided_slice %125 {offsets = [0, 0], sizes = [16, 16], strides = [1, 1]} : vector<16x32xf32> to vector<16x16xf32>
    %127 = vector.extract_strided_slice %125 {offsets = [0, 16], sizes = [16, 16], strides = [1, 1]} : vector<16x32xf32> to vector<16x16xf32>
    %128 = vector.extract_strided_slice %115 {offsets = [0, 32], sizes = [16, 16], strides = [1, 1]} : vector<16x48xf32> to vector<16x16xf32>
    %129 = vector.extract_strided_slice %117 {offsets = [0, 32], sizes = [16, 16], strides = [1, 1]} : vector<16x48xf32> to vector<16x16xf32>
    %130 = arith.mulf %126, %129 : vector<16x16xf32>
    %131 = arith.addf %128, %130 : vector<16x16xf32>
    %132 = math.tanh %131 : vector<16x16xf32>
    %cst_47 = arith.constant 1.000000e+00 : f32
    %133 = vector.broadcast %cst_47 : f32 to vector<16x16xf32>
    %134 = arith.subf %133, %127 : vector<16x16xf32>
    %135 = arith.mulf %134, %132 : vector<16x16xf32>
    %136 = arith.mulf %127, %93 : vector<16x16xf32>
    %137 = arith.addf %135, %136 : vector<16x16xf32>
    %138 = arith.index_cast %107 : i32 to index
    %c0_48 = arith.constant 0 : index
    %139 = vector.load %arg7[%138, %c0_48] : memref<64x16xf32, #tpu.memory_space<vmem>>, vector<8x16xf32>
    %140 = vector.extract_strided_slice %137 {offsets = [0, 0], sizes = [8, 16], strides = [1, 1]} : vector<16x16xf32> to vector<8x16xf32>
    %141 = arith.addf %139, %140 : vector<8x16xf32>
    %142 = arith.index_cast %107 : i32 to index
    %c0_49 = arith.constant 0 : index
    %143 = vector.load %arg7[%142, %c0_49] : memref<64x16xf32, #tpu.memory_space<vmem>>, vector<8x16xf32>
    tpu.vector_store %arg7[%142, %c0_49], %141 {strides = array<i32>} : memref<64x16xf32, #tpu.memory_space<vmem>>, vector<8x16xf32>,
    %144 = arith.index_cast %110 : i32 to index
    %c0_50 = arith.constant 0 : index
    %145 = vector.load %arg7[%144, %c0_50] : memref<64x16xf32, #tpu.memory_space<vmem>>, vector<8x16xf32>
    %146 = vector.extract_strided_slice %137 {offsets = [8, 0], sizes = [8, 16], strides = [1, 1]} : vector<16x16xf32> to vector<8x16xf32>
    %147 = arith.addf %145, %146 : vector<8x16xf32>
    %148 = arith.index_cast %110 : i32 to index
    %c0_51 = arith.constant 0 : index
    %149 = vector.load %arg7[%148, %c0_51] : memref<64x16xf32, #tpu.memory_space<vmem>>, vector<8x16xf32>
    tpu.vector_store %arg7[%148, %c0_51], %147 {strides = array<i32>} : memref<64x16xf32, #tpu.memory_space<vmem>>, vector<8x16xf32>,
    %c3_i32 = arith.constant 3 : i32
    %c8_i32_52 = arith.constant 8 : i32
    %150 = arith.muli %c3_i32, %c8_i32_52 : i32
    %151 = tpu.assume_multiple %150, 8 : i32
    %c7_i32_53 = arith.constant 7 : i32
    %152 = arith.subi %c7_i32_53, %c3_i32 : i32
    %c8_i32_54 = arith.constant 8 : i32
    %153 = arith.muli %152, %c8_i32_54 : i32
    %154 = tpu.assume_multiple %153, 8 : i32
    %155 = arith.index_cast %151 : i32 to index
    %c0_55 = arith.constant 0 : index
    %156 = vector.load %arg5[%155, %c0_55] : memref<64x48xf32, #tpu.memory_space<vmem>>, vector<8x48xf32>
    %157 = arith.index_cast %154 : i32 to index
    %c0_56 = arith.constant 0 : index
    %158 = vector.load %arg6[%157, %c0_56] : memref<64x48xf32, #tpu.memory_space<vmem>>, vector<8x48xf32>
    %159 = tpu.concatenate %156, %158 in 0 : vector<8x48xf32>, vector<8x48xf32> -> vector<16x48xf32>
    %cst_57 = arith.constant dense<0.000000e+00> : vector<16x48xf32>
    %160 = tpu.matmul %137, %15, %cst_57 {dimension_numbers = #tpu.dot_dimension_numbers<[1], [0], [0], [1], [0, 0, 1, 1], [], []>} : vector<16x16xf32>, vector<16x48xf32>, vector<16x48xf32> -> vector<16x48xf32>
    %161 = arith.addf %160, %16 : vector<16x48xf32>
    %162 = vector.extract_strided_slice %159 {offsets = [0, 0], sizes = [16, 32], strides = [1, 1]} : vector<16x48xf32> to vector<16x32xf32>
    %163 = vector.extract_strided_slice %161 {offsets = [0, 0], sizes = [16, 32], strides = [1, 1]} : vector<16x48xf32> to vector<16x32xf32>
    %164 = arith.addf %162, %163 : vector<16x32xf32>
    %165 = arith.negf %164 : vector<16x32xf32>
    %166 = math.exp %165 : vector<16x32xf32>
    %cst_58 = arith.constant 1.000000e+00 : f32
    %167 = vector.broadcast %cst_58 : f32 to vector<16x32xf32>
    %168 = arith.addf %167, %166 : vector<16x32xf32>
    %169 = arith.divf %167, %168 : vector<16x32xf32>
    %170 = vector.extract_strided_slice %169 {offsets = [0, 0], sizes = [16, 16], strides = [1, 1]} : vector<16x32xf32> to vector<16x16xf32>
    %171 = vector.extract_strided_slice %169 {offsets = [0, 16], sizes = [16, 16], strides = [1, 1]} : vector<16x32xf32> to vector<16x16xf32>
    %172 = vector.extract_strided_slice %159 {offsets = [0, 32], sizes = [16, 16], strides = [1, 1]} : vector<16x48xf32> to vector<16x16xf32>
    %173 = vector.extract_strided_slice %161 {offsets = [0, 32], sizes = [16, 16], strides = [1, 1]} : vector<16x48xf32> to vector<16x16xf32>
    %174 = arith.mulf %170, %173 : vector<16x16xf32>
    %175 = arith.addf %172, %174 : vector<16x16xf32>
    %176 = math.tanh %175 : vector<16x16xf32>
    %cst_59 = arith.constant 1.000000e+00 : f32
    %177 = vector.broadcast %cst_59 : f32 to vector<16x16xf32>
    %178 = arith.subf %177, %171 : vector<16x16xf32>
    %179 = arith.mulf %178, %176 : vector<16x16xf32>
    %180 = arith.mulf %171, %137 : vector<16x16xf32>
    %181 = arith.addf %179, %180 : vector<16x16xf32>
    %182 = arith.index_cast %151 : i32 to index
    %c0_60 = arith.constant 0 : index
    %183 = vector.load %arg7[%182, %c0_60] : memref<64x16xf32, #tpu.memory_space<vmem>>, vector<8x16xf32>
    %184 = vector.extract_strided_slice %181 {offsets = [0, 0], sizes = [8, 16], strides = [1, 1]} : vector<16x16xf32> to vector<8x16xf32>
    %185 = arith.addf %183, %184 : vector<8x16xf32>
    %186 = arith.index_cast %151 : i32 to index
    %c0_61 = arith.constant 0 : index
    %187 = vector.load %arg7[%186, %c0_61] : memref<64x16xf32, #tpu.memory_space<vmem>>, vector<8x16xf32>
    tpu.vector_store %arg7[%186, %c0_61], %185 {strides = array<i32>} : memref<64x16xf32, #tpu.memory_space<vmem>>, vector<8x16xf32>,
    %188 = arith.index_cast %154 : i32 to index
    %c0_62 = arith.constant 0 : index
    %189 = vector.load %arg7[%188, %c0_62] : memref<64x16xf32, #tpu.memory_space<vmem>>, vector<8x16xf32>
    %190 = vector.extract_strided_slice %181 {offsets = [8, 0], sizes = [8, 16], strides = [1, 1]} : vector<16x16xf32> to vector<8x16xf32>
    %191 = arith.addf %189, %190 : vector<8x16xf32>
    %192 = arith.index_cast %154 : i32 to index
    %c0_63 = arith.constant 0 : index
    %193 = vector.load %arg7[%192, %c0_63] : memref<64x16xf32, #tpu.memory_space<vmem>>, vector<8x16xf32>
    tpu.vector_store %arg7[%192, %c0_63], %191 {strides = array<i32>} : memref<64x16xf32, #tpu.memory_space<vmem>>, vector<8x16xf32>,
    %c4_i32 = arith.constant 4 : i32
    %c8_i32_64 = arith.constant 8 : i32
    %194 = arith.muli %c4_i32, %c8_i32_64 : i32
    %195 = tpu.assume_multiple %194, 8 : i32
    %c7_i32_65 = arith.constant 7 : i32
    %196 = arith.subi %c7_i32_65, %c4_i32 : i32
    %c8_i32_66 = arith.constant 8 : i32
    %197 = arith.muli %196, %c8_i32_66 : i32
    %198 = tpu.assume_multiple %197, 8 : i32
    %199 = arith.index_cast %195 : i32 to index
    %c0_67 = arith.constant 0 : index
    %200 = vector.load %arg5[%199, %c0_67] : memref<64x48xf32, #tpu.memory_space<vmem>>, vector<8x48xf32>
    %201 = arith.index_cast %198 : i32 to index
    %c0_68 = arith.constant 0 : index
    %202 = vector.load %arg6[%201, %c0_68] : memref<64x48xf32, #tpu.memory_space<vmem>>, vector<8x48xf32>
    %203 = tpu.concatenate %200, %202 in 0 : vector<8x48xf32>, vector<8x48xf32> -> vector<16x48xf32>
    %cst_69 = arith.constant dense<0.000000e+00> : vector<16x48xf32>
    %204 = tpu.matmul %181, %15, %cst_69 {dimension_numbers = #tpu.dot_dimension_numbers<[1], [0], [0], [1], [0, 0, 1, 1], [], []>} : vector<16x16xf32>, vector<16x48xf32>, vector<16x48xf32> -> vector<16x48xf32>
    %205 = arith.addf %204, %16 : vector<16x48xf32>
    %206 = vector.extract_strided_slice %203 {offsets = [0, 0], sizes = [16, 32], strides = [1, 1]} : vector<16x48xf32> to vector<16x32xf32>
    %207 = vector.extract_strided_slice %205 {offsets = [0, 0], sizes = [16, 32], strides = [1, 1]} : vector<16x48xf32> to vector<16x32xf32>
    %208 = arith.addf %206, %207 : vector<16x32xf32>
    %209 = arith.negf %208 : vector<16x32xf32>
    %210 = math.exp %209 : vector<16x32xf32>
    %cst_70 = arith.constant 1.000000e+00 : f32
    %211 = vector.broadcast %cst_70 : f32 to vector<16x32xf32>
    %212 = arith.addf %211, %210 : vector<16x32xf32>
    %213 = arith.divf %211, %212 : vector<16x32xf32>
    %214 = vector.extract_strided_slice %213 {offsets = [0, 0], sizes = [16, 16], strides = [1, 1]} : vector<16x32xf32> to vector<16x16xf32>
    %215 = vector.extract_strided_slice %213 {offsets = [0, 16], sizes = [16, 16], strides = [1, 1]} : vector<16x32xf32> to vector<16x16xf32>
    %216 = vector.extract_strided_slice %203 {offsets = [0, 32], sizes = [16, 16], strides = [1, 1]} : vector<16x48xf32> to vector<16x16xf32>
    %217 = vector.extract_strided_slice %205 {offsets = [0, 32], sizes = [16, 16], strides = [1, 1]} : vector<16x48xf32> to vector<16x16xf32>
    %218 = arith.mulf %214, %217 : vector<16x16xf32>
    %219 = arith.addf %216, %218 : vector<16x16xf32>
    %220 = math.tanh %219 : vector<16x16xf32>
    %cst_71 = arith.constant 1.000000e+00 : f32
    %221 = vector.broadcast %cst_71 : f32 to vector<16x16xf32>
    %222 = arith.subf %221, %215 : vector<16x16xf32>
    %223 = arith.mulf %222, %220 : vector<16x16xf32>
    %224 = arith.mulf %215, %181 : vector<16x16xf32>
    %225 = arith.addf %223, %224 : vector<16x16xf32>
    %226 = arith.index_cast %195 : i32 to index
    %c0_72 = arith.constant 0 : index
    %227 = vector.load %arg7[%226, %c0_72] : memref<64x16xf32, #tpu.memory_space<vmem>>, vector<8x16xf32>
    %228 = vector.extract_strided_slice %225 {offsets = [0, 0], sizes = [8, 16], strides = [1, 1]} : vector<16x16xf32> to vector<8x16xf32>
    %229 = arith.addf %227, %228 : vector<8x16xf32>
    %230 = arith.index_cast %195 : i32 to index
    %c0_73 = arith.constant 0 : index
    %231 = vector.load %arg7[%230, %c0_73] : memref<64x16xf32, #tpu.memory_space<vmem>>, vector<8x16xf32>
    tpu.vector_store %arg7[%230, %c0_73], %229 {strides = array<i32>} : memref<64x16xf32, #tpu.memory_space<vmem>>, vector<8x16xf32>,
    %232 = arith.index_cast %198 : i32 to index
    %c0_74 = arith.constant 0 : index
    %233 = vector.load %arg7[%232, %c0_74] : memref<64x16xf32, #tpu.memory_space<vmem>>, vector<8x16xf32>
    %234 = vector.extract_strided_slice %225 {offsets = [8, 0], sizes = [8, 16], strides = [1, 1]} : vector<16x16xf32> to vector<8x16xf32>
    %235 = arith.addf %233, %234 : vector<8x16xf32>
    %236 = arith.index_cast %198 : i32 to index
    %c0_75 = arith.constant 0 : index
    %237 = vector.load %arg7[%236, %c0_75] : memref<64x16xf32, #tpu.memory_space<vmem>>, vector<8x16xf32>
    tpu.vector_store %arg7[%236, %c0_75], %235 {strides = array<i32>} : memref<64x16xf32, #tpu.memory_space<vmem>>, vector<8x16xf32>,
    %c5_i32 = arith.constant 5 : i32
    %c8_i32_76 = arith.constant 8 : i32
    %238 = arith.muli %c5_i32, %c8_i32_76 : i32
    %239 = tpu.assume_multiple %238, 8 : i32
    %c7_i32_77 = arith.constant 7 : i32
    %240 = arith.subi %c7_i32_77, %c5_i32 : i32
    %c8_i32_78 = arith.constant 8 : i32
    %241 = arith.muli %240, %c8_i32_78 : i32
    %242 = tpu.assume_multiple %241, 8 : i32
    %243 = arith.index_cast %239 : i32 to index
    %c0_79 = arith.constant 0 : index
    %244 = vector.load %arg5[%243, %c0_79] : memref<64x48xf32, #tpu.memory_space<vmem>>, vector<8x48xf32>
    %245 = arith.index_cast %242 : i32 to index
    %c0_80 = arith.constant 0 : index
    %246 = vector.load %arg6[%245, %c0_80] : memref<64x48xf32, #tpu.memory_space<vmem>>, vector<8x48xf32>
    %247 = tpu.concatenate %244, %246 in 0 : vector<8x48xf32>, vector<8x48xf32> -> vector<16x48xf32>
    %cst_81 = arith.constant dense<0.000000e+00> : vector<16x48xf32>
    %248 = tpu.matmul %225, %15, %cst_81 {dimension_numbers = #tpu.dot_dimension_numbers<[1], [0], [0], [1], [0, 0, 1, 1], [], []>} : vector<16x16xf32>, vector<16x48xf32>, vector<16x48xf32> -> vector<16x48xf32>
    %249 = arith.addf %248, %16 : vector<16x48xf32>
    %250 = vector.extract_strided_slice %247 {offsets = [0, 0], sizes = [16, 32], strides = [1, 1]} : vector<16x48xf32> to vector<16x32xf32>
    %251 = vector.extract_strided_slice %249 {offsets = [0, 0], sizes = [16, 32], strides = [1, 1]} : vector<16x48xf32> to vector<16x32xf32>
    %252 = arith.addf %250, %251 : vector<16x32xf32>
    %253 = arith.negf %252 : vector<16x32xf32>
    %254 = math.exp %253 : vector<16x32xf32>
    %cst_82 = arith.constant 1.000000e+00 : f32
    %255 = vector.broadcast %cst_82 : f32 to vector<16x32xf32>
    %256 = arith.addf %255, %254 : vector<16x32xf32>
    %257 = arith.divf %255, %256 : vector<16x32xf32>
    %258 = vector.extract_strided_slice %257 {offsets = [0, 0], sizes = [16, 16], strides = [1, 1]} : vector<16x32xf32> to vector<16x16xf32>
    %259 = vector.extract_strided_slice %257 {offsets = [0, 16], sizes = [16, 16], strides = [1, 1]} : vector<16x32xf32> to vector<16x16xf32>
    %260 = vector.extract_strided_slice %247 {offsets = [0, 32], sizes = [16, 16], strides = [1, 1]} : vector<16x48xf32> to vector<16x16xf32>
    %261 = vector.extract_strided_slice %249 {offsets = [0, 32], sizes = [16, 16], strides = [1, 1]} : vector<16x48xf32> to vector<16x16xf32>
    %262 = arith.mulf %258, %261 : vector<16x16xf32>
    %263 = arith.addf %260, %262 : vector<16x16xf32>
    %264 = math.tanh %263 : vector<16x16xf32>
    %cst_83 = arith.constant 1.000000e+00 : f32
    %265 = vector.broadcast %cst_83 : f32 to vector<16x16xf32>
    %266 = arith.subf %265, %259 : vector<16x16xf32>
    %267 = arith.mulf %266, %264 : vector<16x16xf32>
    %268 = arith.mulf %259, %225 : vector<16x16xf32>
    %269 = arith.addf %267, %268 : vector<16x16xf32>
    %270 = arith.index_cast %239 : i32 to index
    %c0_84 = arith.constant 0 : index
    %271 = vector.load %arg7[%270, %c0_84] : memref<64x16xf32, #tpu.memory_space<vmem>>, vector<8x16xf32>
    %272 = vector.extract_strided_slice %269 {offsets = [0, 0], sizes = [8, 16], strides = [1, 1]} : vector<16x16xf32> to vector<8x16xf32>
    %273 = arith.addf %271, %272 : vector<8x16xf32>
    %274 = arith.index_cast %239 : i32 to index
    %c0_85 = arith.constant 0 : index
    %275 = vector.load %arg7[%274, %c0_85] : memref<64x16xf32, #tpu.memory_space<vmem>>, vector<8x16xf32>
    tpu.vector_store %arg7[%274, %c0_85], %273 {strides = array<i32>} : memref<64x16xf32, #tpu.memory_space<vmem>>, vector<8x16xf32>,
    %276 = arith.index_cast %242 : i32 to index
    %c0_86 = arith.constant 0 : index
    %277 = vector.load %arg7[%276, %c0_86] : memref<64x16xf32, #tpu.memory_space<vmem>>, vector<8x16xf32>
    %278 = vector.extract_strided_slice %269 {offsets = [8, 0], sizes = [8, 16], strides = [1, 1]} : vector<16x16xf32> to vector<8x16xf32>
    %279 = arith.addf %277, %278 : vector<8x16xf32>
    %280 = arith.index_cast %242 : i32 to index
    %c0_87 = arith.constant 0 : index
    %281 = vector.load %arg7[%280, %c0_87] : memref<64x16xf32, #tpu.memory_space<vmem>>, vector<8x16xf32>
    tpu.vector_store %arg7[%280, %c0_87], %279 {strides = array<i32>} : memref<64x16xf32, #tpu.memory_space<vmem>>, vector<8x16xf32>,
    %c6_i32 = arith.constant 6 : i32
    %c8_i32_88 = arith.constant 8 : i32
    %282 = arith.muli %c6_i32, %c8_i32_88 : i32
    %283 = tpu.assume_multiple %282, 8 : i32
    %c7_i32_89 = arith.constant 7 : i32
    %284 = arith.subi %c7_i32_89, %c6_i32 : i32
    %c8_i32_90 = arith.constant 8 : i32
    %285 = arith.muli %284, %c8_i32_90 : i32
    %286 = tpu.assume_multiple %285, 8 : i32
    %287 = arith.index_cast %283 : i32 to index
    %c0_91 = arith.constant 0 : index
    %288 = vector.load %arg5[%287, %c0_91] : memref<64x48xf32, #tpu.memory_space<vmem>>, vector<8x48xf32>
    %289 = arith.index_cast %286 : i32 to index
    %c0_92 = arith.constant 0 : index
    %290 = vector.load %arg6[%289, %c0_92] : memref<64x48xf32, #tpu.memory_space<vmem>>, vector<8x48xf32>
    %291 = tpu.concatenate %288, %290 in 0 : vector<8x48xf32>, vector<8x48xf32> -> vector<16x48xf32>
    %cst_93 = arith.constant dense<0.000000e+00> : vector<16x48xf32>
    %292 = tpu.matmul %269, %15, %cst_93 {dimension_numbers = #tpu.dot_dimension_numbers<[1], [0], [0], [1], [0, 0, 1, 1], [], []>} : vector<16x16xf32>, vector<16x48xf32>, vector<16x48xf32> -> vector<16x48xf32>
    %293 = arith.addf %292, %16 : vector<16x48xf32>
    %294 = vector.extract_strided_slice %291 {offsets = [0, 0], sizes = [16, 32], strides = [1, 1]} : vector<16x48xf32> to vector<16x32xf32>
    %295 = vector.extract_strided_slice %293 {offsets = [0, 0], sizes = [16, 32], strides = [1, 1]} : vector<16x48xf32> to vector<16x32xf32>
    %296 = arith.addf %294, %295 : vector<16x32xf32>
    %297 = arith.negf %296 : vector<16x32xf32>
    %298 = math.exp %297 : vector<16x32xf32>
    %cst_94 = arith.constant 1.000000e+00 : f32
    %299 = vector.broadcast %cst_94 : f32 to vector<16x32xf32>
    %300 = arith.addf %299, %298 : vector<16x32xf32>
    %301 = arith.divf %299, %300 : vector<16x32xf32>
    %302 = vector.extract_strided_slice %301 {offsets = [0, 0], sizes = [16, 16], strides = [1, 1]} : vector<16x32xf32> to vector<16x16xf32>
    %303 = vector.extract_strided_slice %301 {offsets = [0, 16], sizes = [16, 16], strides = [1, 1]} : vector<16x32xf32> to vector<16x16xf32>
    %304 = vector.extract_strided_slice %291 {offsets = [0, 32], sizes = [16, 16], strides = [1, 1]} : vector<16x48xf32> to vector<16x16xf32>
    %305 = vector.extract_strided_slice %293 {offsets = [0, 32], sizes = [16, 16], strides = [1, 1]} : vector<16x48xf32> to vector<16x16xf32>
    %306 = arith.mulf %302, %305 : vector<16x16xf32>
    %307 = arith.addf %304, %306 : vector<16x16xf32>
    %308 = math.tanh %307 : vector<16x16xf32>
    %cst_95 = arith.constant 1.000000e+00 : f32
    %309 = vector.broadcast %cst_95 : f32 to vector<16x16xf32>
    %310 = arith.subf %309, %303 : vector<16x16xf32>
    %311 = arith.mulf %310, %308 : vector<16x16xf32>
    %312 = arith.mulf %303, %269 : vector<16x16xf32>
    %313 = arith.addf %311, %312 : vector<16x16xf32>
    %314 = arith.index_cast %283 : i32 to index
    %c0_96 = arith.constant 0 : index
    %315 = vector.load %arg7[%314, %c0_96] : memref<64x16xf32, #tpu.memory_space<vmem>>, vector<8x16xf32>
    %316 = vector.extract_strided_slice %313 {offsets = [0, 0], sizes = [8, 16], strides = [1, 1]} : vector<16x16xf32> to vector<8x16xf32>
    %317 = arith.addf %315, %316 : vector<8x16xf32>
    %318 = arith.index_cast %283 : i32 to index
    %c0_97 = arith.constant 0 : index
    %319 = vector.load %arg7[%318, %c0_97] : memref<64x16xf32, #tpu.memory_space<vmem>>, vector<8x16xf32>
    tpu.vector_store %arg7[%318, %c0_97], %317 {strides = array<i32>} : memref<64x16xf32, #tpu.memory_space<vmem>>, vector<8x16xf32>,
    %320 = arith.index_cast %286 : i32 to index
    %c0_98 = arith.constant 0 : index
    %321 = vector.load %arg7[%320, %c0_98] : memref<64x16xf32, #tpu.memory_space<vmem>>, vector<8x16xf32>
    %322 = vector.extract_strided_slice %313 {offsets = [8, 0], sizes = [8, 16], strides = [1, 1]} : vector<16x16xf32> to vector<8x16xf32>
    %323 = arith.addf %321, %322 : vector<8x16xf32>
    %324 = arith.index_cast %286 : i32 to index
    %c0_99 = arith.constant 0 : index
    %325 = vector.load %arg7[%324, %c0_99] : memref<64x16xf32, #tpu.memory_space<vmem>>, vector<8x16xf32>
    tpu.vector_store %arg7[%324, %c0_99], %323 {strides = array<i32>} : memref<64x16xf32, #tpu.memory_space<vmem>>, vector<8x16xf32>,
    %c7_i32_100 = arith.constant 7 : i32
    %c8_i32_101 = arith.constant 8 : i32
    %326 = arith.muli %c7_i32_100, %c8_i32_101 : i32
    %327 = tpu.assume_multiple %326, 8 : i32
    %c7_i32_102 = arith.constant 7 : i32
    %328 = arith.subi %c7_i32_102, %c7_i32_100 : i32
    %c8_i32_103 = arith.constant 8 : i32
    %329 = arith.muli %328, %c8_i32_103 : i32
    %330 = tpu.assume_multiple %329, 8 : i32
    %331 = arith.index_cast %327 : i32 to index
    %c0_104 = arith.constant 0 : index
    %332 = vector.load %arg5[%331, %c0_104] : memref<64x48xf32, #tpu.memory_space<vmem>>, vector<8x48xf32>
    %333 = arith.index_cast %330 : i32 to index
    %c0_105 = arith.constant 0 : index
    %334 = vector.load %arg6[%333, %c0_105] : memref<64x48xf32, #tpu.memory_space<vmem>>, vector<8x48xf32>
    %335 = tpu.concatenate %332, %334 in 0 : vector<8x48xf32>, vector<8x48xf32> -> vector<16x48xf32>
    %cst_106 = arith.constant dense<0.000000e+00> : vector<16x48xf32>
    %336 = tpu.matmul %313, %15, %cst_106 {dimension_numbers = #tpu.dot_dimension_numbers<[1], [0], [0], [1], [0, 0, 1, 1], [], []>} : vector<16x16xf32>, vector<16x48xf32>, vector<16x48xf32> -> vector<16x48xf32>
    %337 = arith.addf %336, %16 : vector<16x48xf32>
    %338 = vector.extract_strided_slice %335 {offsets = [0, 0], sizes = [16, 32], strides = [1, 1]} : vector<16x48xf32> to vector<16x32xf32>
    %339 = vector.extract_strided_slice %337 {offsets = [0, 0], sizes = [16, 32], strides = [1, 1]} : vector<16x48xf32> to vector<16x32xf32>
    %340 = arith.addf %338, %339 : vector<16x32xf32>
    %341 = arith.negf %340 : vector<16x32xf32>
    %342 = math.exp %341 : vector<16x32xf32>
    %cst_107 = arith.constant 1.000000e+00 : f32
    %343 = vector.broadcast %cst_107 : f32 to vector<16x32xf32>
    %344 = arith.addf %343, %342 : vector<16x32xf32>
    %345 = arith.divf %343, %344 : vector<16x32xf32>
    %346 = vector.extract_strided_slice %345 {offsets = [0, 0], sizes = [16, 16], strides = [1, 1]} : vector<16x32xf32> to vector<16x16xf32>
    %347 = vector.extract_strided_slice %345 {offsets = [0, 16], sizes = [16, 16], strides = [1, 1]} : vector<16x32xf32> to vector<16x16xf32>
    %348 = vector.extract_strided_slice %335 {offsets = [0, 32], sizes = [16, 16], strides = [1, 1]} : vector<16x48xf32> to vector<16x16xf32>
    %349 = vector.extract_strided_slice %337 {offsets = [0, 32], sizes = [16, 16], strides = [1, 1]} : vector<16x48xf32> to vector<16x16xf32>
    %350 = arith.mulf %346, %349 : vector<16x16xf32>
    %351 = arith.addf %348, %350 : vector<16x16xf32>
    %352 = math.tanh %351 : vector<16x16xf32>
    %cst_108 = arith.constant 1.000000e+00 : f32
    %353 = vector.broadcast %cst_108 : f32 to vector<16x16xf32>
    %354 = arith.subf %353, %347 : vector<16x16xf32>
    %355 = arith.mulf %354, %352 : vector<16x16xf32>
    %356 = arith.mulf %347, %313 : vector<16x16xf32>
    %357 = arith.addf %355, %356 : vector<16x16xf32>
    %358 = arith.index_cast %327 : i32 to index
    %c0_109 = arith.constant 0 : index
    %359 = vector.load %arg7[%358, %c0_109] : memref<64x16xf32, #tpu.memory_space<vmem>>, vector<8x16xf32>
    %360 = vector.extract_strided_slice %357 {offsets = [0, 0], sizes = [8, 16], strides = [1, 1]} : vector<16x16xf32> to vector<8x16xf32>
    %361 = arith.addf %359, %360 : vector<8x16xf32>
    %362 = arith.index_cast %327 : i32 to index
    %c0_110 = arith.constant 0 : index
    %363 = vector.load %arg7[%362, %c0_110] : memref<64x16xf32, #tpu.memory_space<vmem>>, vector<8x16xf32>
    tpu.vector_store %arg7[%362, %c0_110], %361 {strides = array<i32>} : memref<64x16xf32, #tpu.memory_space<vmem>>, vector<8x16xf32>,
    %364 = arith.index_cast %330 : i32 to index
    %c0_111 = arith.constant 0 : index
    %365 = vector.load %arg7[%364, %c0_111] : memref<64x16xf32, #tpu.memory_space<vmem>>, vector<8x16xf32>
    %366 = vector.extract_strided_slice %357 {offsets = [8, 0], sizes = [8, 16], strides = [1, 1]} : vector<16x16xf32> to vector<8x16xf32>
    %367 = arith.addf %365, %366 : vector<8x16xf32>
    %368 = arith.index_cast %330 : i32 to index
    %c0_112 = arith.constant 0 : index
    %369 = vector.load %arg7[%368, %c0_112] : memref<64x16xf32, #tpu.memory_space<vmem>>, vector<8x16xf32>
    tpu.vector_store %arg7[%368, %c0_112], %367 {strides = array<i32>} : memref<64x16xf32, #tpu.memory_space<vmem>>, vector<8x16xf32>,
    %c8_i32_113 = arith.constant 8 : i32
    %370 = vector.extract_strided_slice %357 {offsets = [0, 0], sizes = [8, 16], strides = [1, 1]} : vector<16x16xf32> to vector<8x16xf32>
    %371 = vector.extract_strided_slice %357 {offsets = [8, 0], sizes = [8, 16], strides = [1, 1]} : vector<16x16xf32> to vector<8x16xf32>
    %372 = arith.addf %370, %371 : vector<8x16xf32>
    %c0_114 = arith.constant 0 : index
    %c0_115 = arith.constant 0 : index
    %373 = vector.load %arg4[%c0_114, %c0_115] : memref<8x16xf32, #tpu.memory_space<vmem>>, vector<8x16xf32>
    tpu.vector_store %arg4[%c0_114, %c0_115], %372 {strides = array<i32>} : memref<8x16xf32, #tpu.memory_space<vmem>>, vector<8x16xf32>,
    %c0_116 = arith.constant 0 : index
    %c0_117 = arith.constant 0 : index
    %374 = vector.load %arg7[%c0_116, %c0_117] : memref<64x16xf32, #tpu.memory_space<vmem>>, vector<64x16xf32>
    %c80 = arith.constant 80 : index
    %c0_118 = arith.constant 0 : index
    %375 = vector.load %arg2[%c80, %c0_118] : memref<136x128xf32, #tpu.memory_space<vmem>>, vector<16x16xf32>
    %cst_119 = arith.constant dense<0.000000e+00> : vector<64x16xf32>
    %376 = tpu.matmul %374, %375, %cst_119 {dimension_numbers = #tpu.dot_dimension_numbers<[1], [0], [0], [1], [0, 0, 1, 1], [], []>} : vector<64x16xf32>, vector<16x16xf32>, vector<64x16xf32> -> vector<64x16xf32>
    %c96 = arith.constant 96 : index
    %c0_120 = arith.constant 0 : index
    %377 = vector.load %arg2[%c96, %c0_120] : memref<136x128xf32, #tpu.memory_space<vmem>>, vector<1x16xf32>
    %378 = vector.broadcast %377 : vector<1x16xf32> to vector<64x16xf32>
    %379 = arith.addf %376, %378 : vector<64x16xf32>
    %380 = math.tanh %379 : vector<64x16xf32>
    %c104 = arith.constant 104 : index
    %c0_121 = arith.constant 0 : index
    %381 = vector.load %arg2[%c104, %c0_121] : memref<136x128xf32, #tpu.memory_space<vmem>>, vector<1x16xf32>
    %382 = vector.broadcast %381 : vector<1x16xf32> to vector<64x16xf32>
    %383 = arith.mulf %380, %382 : vector<64x16xf32>
    %384 = vector.shape_cast %383 : vector<64x16xf32> to vector<8x8x16xf32>
    %cst_122 = arith.constant dense<0.000000e+00> : vector<8x8xf32>
    %385 = vector.multi_reduction <add>, %384, %cst_122 [2] : vector<8x8x16xf32> to vector<8x8xf32>
    %386 = vector.shape_cast %385 : vector<8x8xf32> to vector<8x8x1xf32>
    %387 = math.tanh %386 : vector<8x8x1xf32>
    %388 = math.exp %387 : vector<8x8x1xf32>
    %389 = vector.shape_cast %374 : vector<64x16xf32> to vector<8x8x16xf32>
    %cst_123 = arith.constant dense<0.000000e+00> : vector<8x1xf32>
    %390 = vector.multi_reduction <add>, %388, %cst_123 [0] : vector<8x8x1xf32> to vector<8x1xf32>
    %391 = vector.broadcast %388 : vector<8x8x1xf32> to vector<8x8x16xf32>
    %392 = arith.mulf %389, %391 : vector<8x8x16xf32>
    %cst_124 = arith.constant dense<0.000000e+00> : vector<8x16xf32>
    %393 = vector.multi_reduction <add>, %392, %cst_124 [0] : vector<8x8x16xf32> to vector<8x16xf32>
    %394 = tpu.reciprocal %390 {approx = true} : vector<8x1xf32> -> vector<8x1xf32>
    %395 = vector.broadcast %394 : vector<8x1xf32> to vector<8x16xf32>
    %396 = arith.mulf %393, %395 : vector<8x16xf32>
    %c112 = arith.constant 112 : index
    %c0_125 = arith.constant 0 : index
    %397 = vector.load %arg2[%c112, %c0_125] : memref<136x128xf32, #tpu.memory_space<vmem>>, vector<16x4xf32>
    %cst_126 = arith.constant dense<0.000000e+00> : vector<8x4xf32>
    %398 = tpu.matmul %396, %397, %cst_126 {dimension_numbers = #tpu.dot_dimension_numbers<[1], [0], [0], [1], [0, 0, 1, 1], [], []>} : vector<8x16xf32>, vector<16x4xf32>, vector<8x4xf32> -> vector<8x4xf32>
    %c128 = arith.constant 128 : index
    %c0_127 = arith.constant 0 : index
    %399 = vector.load %arg2[%c128, %c0_127] : memref<136x128xf32, #tpu.memory_space<vmem>>, vector<1x4xf32>
    %400 = vector.broadcast %399 : vector<1x4xf32> to vector<8x4xf32>
    %401 = arith.addf %398, %400 : vector<8x4xf32>
    %c0_128 = arith.constant 0 : index
    %c0_129 = arith.constant 0 : index
    %402 = vector.load %arg3[%c0_128, %c0_129] : memref<8x4xf32, #tpu.memory_space<vmem>>, vector<8x4xf32>
    tpu.vector_store %arg3[%c0_128, %c0_129], %401 {strides = array<i32>} : memref<8x4xf32, #tpu.memory_space<vmem>>, vector<8x4xf32>,
    return
  }
}

</mosaic_0001>

<llo_original>
// kernel: tpu_custom_call.1
$region0: #{tpu_custom_call.1}
  #allocation0 [shape = 'u32[]', space=smem, size = 0x4, offset = 0x4, fixed_abs, tag = 'smem constant byte address 0x4 - core index']
  #allocation1 [shape = 'u32[72,128]{1,0:T(1,128)}', space=vmem, size = 0x9000, scoped, tag = 'internal scratch']
  #allocation2 [shape = 'f32[64,48]{1,0:T(8,128)}', space=vmem, size = 0x8000, scoped, tag = 'scratch operand']
  #allocation3 [shape = 'f32[64,48]{1,0:T(8,128)}', space=vmem, size = 0x8000, scoped, tag = 'scratch operand']
  #allocation4 [shape = 'f32[64,16]{1,0:T(8,128)}', space=vmem, size = 0x8000, scoped, tag = 'scratch operand']
  %s0 = inlined_call_operand.vmem [shape: f32[64,16], index: 0, kind: input, shape index: {}]
  %s1 = inlined_call_operand.vmem [shape: f32[16,16], index: 1, kind: input, shape index: {}]
  %s2 = inlined_call_operand.hbm [shape: f32[136,128], index: 2, kind: input, shape index: {}]
  %s3 = inlined_call_operand.vmem [shape: f32[8,4], index: 3, kind: output, shape index: {0}]
  %s4 = inlined_call_operand.hbm [shape: f32[8,16], index: 4, kind: output, shape index: {1}]
  %5 = xla_tuple %s3, %s4
  %s6 = sld [smem:[#allocation0]]
  $region34: #{tpu_custom_call.1} parent=0
    _
  %s8 = ssub.s32 1, %s6
  %s9 = scalar_select 0, %s8, %s6
  $region1: #{tpu_custom_call.1} parent=0
    #allocation5 [shape = 'u8[69632]{0}', space=vmem, size = 0x11000, scoped, tag = 'input window, operand 2, single buffered']
    #allocation6 [shape = 's32[1]{0}', space=sflag, size = 0x4, scoped, tag = 'scoped memory for tpu_custom_call.1']
    #allocation7 [shape = 's32[1]{0}', space=sflag, size = 0x4, scoped, tag = 'scoped memory for tpu_custom_call.1']
    #allocation8 [shape = 'u8[4096]{0}', space=vmem, size = 0x1000, scoped, tag = 'output window, operand 1, single buffered']
    %10 = vsyncpa [#allocation6], 0
    %11 = vsyncpa [#allocation7], 0
    // Predicated region
    $region2: #{tpu_custom_call.1} parent=1 // pred_check
      _
    $region3: #{tpu_custom_call.1} parent=1 // pred_check_branch
      %13 = sbr.rel (0) target = $region5
    $region4: #{tpu_custom_call.1} parent=1 // pred_region
      _
    $region5: #{tpu_custom_call.1} parent=1 // pred_fallthru
      _
    // Predicated region
    $region6: #{tpu_custom_call.1} parent=1 // pred_check
      _
    $region7: #{tpu_custom_call.1} parent=1 // pred_check_branch
      %15 = sbr.rel (0) target = $region9
    $region8: #{tpu_custom_call.1} parent=1 // pred_region
      _
    $region9: #{tpu_custom_call.1} parent=1 // pred_fallthru
      _
    // Predicated region
    $region10: #{tpu_custom_call.1} parent=1 // pred_check
      _
    $region11: #{tpu_custom_call.1} parent=1 // pred_check_branch
      %17 = sbr.rel (0) target = $region13
    $region12: #{tpu_custom_call.1} parent=1 // pred_region
      %19 = vsyncadd [#allocation6], 0
      %s20 = sshll.u32 %s2, 4
      %s21 = int_to_ptr.hbm [resolvable:$true] %s20
      %s22 = sshll.u32 [#allocation5], 4
      %s23 = int_to_ptr.vmem [resolvable:$true] %s22
      %28 = dma.hbm_to_vmem [thread:$0]  %s21, 2176, %s23, [#allocation6], 128, 128, 8
    $region13: #{tpu_custom_call.1} parent=1 // pred_fallthru
      _
    // Predicated region
    $region14: #{tpu_custom_call.1} parent=1 // pred_check
      _
    $region15: #{tpu_custom_call.1} parent=1 // pred_check_branch
      %30 = sbr.rel (0) target = $region17
    $region16: #{tpu_custom_call.1} parent=1 // pred_region
      %32 = dma.done [#allocation6], 2176
    $region17: #{tpu_custom_call.1} parent=1 // pred_fallthru
      _
    %v33 = vld [vmem:[%s0] sm:$0xff]
    %v34 = vld [vmem:[%s0 + $0x8] sm:$0xff]
    %v35 = vld [vmem:[%s0 + $0x10] sm:$0xff]
    %v36 = vld [vmem:[%s0 + $0x18] sm:$0xff]
    %v37 = vld [vmem:[%s0 + $0x20] sm:$0xff]
    %v38 = vld [vmem:[%s0 + $0x28] sm:$0xff]
    %v39 = vld [vmem:[%s0 + $0x30] sm:$0xff]
    %v40 = vld [vmem:[%s0 + $0x38] sm:$0xff]
    %v41 = vld [vmem:[#allocation5] sm:$0xff]
    %v42 = vld [vmem:[#allocation5 + $0x8] sm:$0xff]
    %v43 = vld [vmem:[#allocation5 + $0x20] sm:$0x1]
    %v44 = vperm.slane %v43, 0
    %vm45 = vcmask 130048
    %v47 = vsel %vm45, %v33, 0
    %v50 = vsel %vm45, %v34, 0
    %v53 = vsel %vm45, %v35, 0
    %v56 = vsel %vm45, %v36, 0
    %v59 = vsel %vm45, %v37, 0
    %v62 = vsel %vm45, %v38, 0
    %v65 = vsel %vm45, %v39, 0
    %v68 = vsel %vm45, %v40, 0
    %70 = vmatpush.msra.mxu0 0.0
    %71 = vmatpush.msra.mxu0 0.0
    %72 = vmatpush.msra.mxu0 0.0
    %73 = vmatpush.msra.mxu0 0.0
    %74 = vmatpush.msra.mxu0 0.0
    %75 = vmatpush.msra.mxu0 0.0
    %76 = vmatpush.msra.mxu0 0.0
    %77 = vmatpush.msra.mxu0 0.0
    %78 = vmatpush.msra.mxu0 0.0
    %79 = vmatpush.msra.mxu0 0.0
    %80 = vmatpush.msra.mxu0 0.0
    %81 = vmatpush.msra.mxu0 0.0
    %82 = vmatpush.msra.mxu0 0.0
    %83 = vmatpush.msra.mxu0 0.0
    %84 = vmatpush.msra.mxu0 %v42
    %85 = vmatpush.msra.mxu0 %v41
    %86 = vmatmul.f32.gmra.mxu0 %v47
    %v87 = vpop.f32.mrf.mxu0
    %v88 = vadd.f32 %v44, %v87
    %89 = vmatmul.f32.gmra.mxu0 %v50
    %v90 = vpop.f32.mrf.mxu0
    %v91 = vadd.f32 %v44, %v90
    %92 = vmatmul.f32.gmra.mxu0 %v53
    %v93 = vpop.f32.mrf.mxu0
    %v94 = vadd.f32 %v44, %v93
    %95 = vmatmul.f32.gmra.mxu0 %v56
    %v96 = vpop.f32.mrf.mxu0
    %v97 = vadd.f32 %v44, %v96
    %98 = vmatmul.f32.gmra.mxu0 %v59
    %v99 = vpop.f32.mrf.mxu0
    %v100 = vadd.f32 %v44, %v99
    %101 = vmatmul.f32.gmra.mxu0 %v62
    %v102 = vpop.f32.mrf.mxu0
    %v103 = vadd.f32 %v44, %v102
    %104 = vmatmul.f32.gmra.mxu0 %v65
    %v105 = vpop.f32.mrf.mxu0
    %v106 = vadd.f32 %v44, %v105
    %107 = vmatmul.f32.gmra.mxu0 %v68
    %v108 = vpop.f32.mrf.mxu0
    %v109 = vadd.f32 %v44, %v108
    %110 = vdwg.mxu0
    %vm111 = vcmask 392192
    %112 = vst.msk [vmem:[#allocation2] sm:$0xff] %vm111, %v88
    %113 = vst.msk [vmem:[#allocation2 + $0x8] sm:$0xff] %vm111, %v91
    %114 = vst.msk [vmem:[#allocation2 + $0x10] sm:$0xff] %vm111, %v94
    %115 = vst.msk [vmem:[#allocation2 + $0x18] sm:$0xff] %vm111, %v97
    %116 = vst.msk [vmem:[#allocation2 + $0x20] sm:$0xff] %vm111, %v100
    %117 = vst.msk [vmem:[#allocation2 + $0x28] sm:$0xff] %vm111, %v103
    %118 = vst.msk [vmem:[#allocation2 + $0x30] sm:$0xff] %vm111, %v106
    %119 = vst.msk [vmem:[#allocation2 + $0x38] sm:$0xff] %vm111, %v109
    %v120 = vld [vmem:[#allocation5 + $0x10] sm:$0xff]
    %v121 = vld [vmem:[#allocation5 + $0x18] sm:$0xff]
    %v122 = vld [vmem:[#allocation5 + $0x28] sm:$0x1]
    %v123 = vperm.slane %v122, 0
    %124 = vmatpush.msra.mxu0 0.0
    %125 = vmatpush.msra.mxu0 0.0
    %126 = vmatpush.msra.mxu0 0.0
    %127 = vmatpush.msra.mxu0 0.0
    %128 = vmatpush.msra.mxu0 0.0
    %129 = vmatpush.msra.mxu0 0.0
    %130 = vmatpush.msra.mxu0 0.0
    %131 = vmatpush.msra.mxu0 0.0
    %132 = vmatpush.msra.mxu0 0.0
    %133 = vmatpush.msra.mxu0 0.0
    %134 = vmatpush.msra.mxu0 0.0
    %135 = vmatpush.msra.mxu0 0.0
    %136 = vmatpush.msra.mxu0 0.0
    %137 = vmatpush.msra.mxu0 0.0
    %138 = vmatpush.msra.mxu0 %v121
    %139 = vmatpush.msra.mxu0 %v120
    %140 = vmatmul.f32.gmra.mxu0 %v47
    %v141 = vpop.f32.mrf.mxu0
    %v142 = vadd.f32 %v123, %v141
    %143 = vmatmul.f32.gmra.mxu0 %v50
    %v144 = vpop.f32.mrf.mxu0
    %v145 = vadd.f32 %v123, %v144
    %146 = vmatmul.f32.gmra.mxu0 %v53
    %v147 = vpop.f32.mrf.mxu0
    %v148 = vadd.f32 %v123, %v147
    %149 = vmatmul.f32.gmra.mxu0 %v56
    %v150 = vpop.f32.mrf.mxu0
    %v151 = vadd.f32 %v123, %v150
    %152 = vmatmul.f32.gmra.mxu0 %v59
    %v153 = vpop.f32.mrf.mxu0
    %v154 = vadd.f32 %v123, %v153
    %155 = vmatmul.f32.gmra.mxu0 %v62
    %v156 = vpop.f32.mrf.mxu0
    %v157 = vadd.f32 %v123, %v156
    %158 = vmatmul.f32.gmra.mxu0 %v65
    %v159 = vpop.f32.mrf.mxu0
    %v160 = vadd.f32 %v123, %v159
    %161 = vmatmul.f32.gmra.mxu0 %v68
    %v162 = vpop.f32.mrf.mxu0
    %v163 = vadd.f32 %v123, %v162
    %164 = vdwg.mxu0
    %165 = vst.msk [vmem:[#allocation3] sm:$0xff] %vm111, %v142
    %166 = vst.msk [vmem:[#allocation3 + $0x8] sm:$0xff] %vm111, %v145
    %167 = vst.msk [vmem:[#allocation3 + $0x10] sm:$0xff] %vm111, %v148
    %168 = vst.msk [vmem:[#allocation3 + $0x18] sm:$0xff] %vm111, %v151
    %169 = vst.msk [vmem:[#allocation3 + $0x20] sm:$0xff] %vm111, %v154
    %170 = vst.msk [vmem:[#allocation3 + $0x28] sm:$0xff] %vm111, %v157
    %171 = vst.msk [vmem:[#allocation3 + $0x30] sm:$0xff] %vm111, %v160
    %172 = vst.msk [vmem:[#allocation3 + $0x38] sm:$0xff] %vm111, %v163
    %173 = vst.msk [vmem:[#allocation4] sm:$0xff] %vm45, 0.0
    %174 = vst.msk [vmem:[#allocation4 + $0x8] sm:$0xff] %vm45, 0.0
    %175 = vst.msk [vmem:[#allocation4 + $0x10] sm:$0xff] %vm45, 0.0
    %176 = vst.msk [vmem:[#allocation4 + $0x18] sm:$0xff] %vm45, 0.0
    %177 = vst.msk [vmem:[#allocation4 + $0x20] sm:$0xff] %vm45, 0.0
    %178 = vst.msk [vmem:[#allocation4 + $0x28] sm:$0xff] %vm45, 0.0
    %179 = vst.msk [vmem:[#allocation4 + $0x30] sm:$0xff] %vm45, 0.0
    %180 = vst.msk [vmem:[#allocation4 + $0x38] sm:$0xff] %vm45, 0.0
    %v181 = vld [vmem:[#allocation5 + $0x30] sm:$0xff]
    %v182 = vld [vmem:[#allocation5 + $0x38] sm:$0xff]
    %v183 = vld [vmem:[#allocation5 + $0x40] sm:$0xff]
    %v184 = vld [vmem:[#allocation5 + $0x48] sm:$0xff]
    %v185 = vld [vmem:[%s1] sm:$0xff]
    %v186 = vld [vmem:[%s1 + $0x8] sm:$0xff]
    %v187 = vld [vmem:[#allocation2] sm:$0xff]
    %s188 = scalar_lea.vmem [#allocation3], 56
    %v189 = vld [vmem:[%s188] sm:$0xff]
    %v191 = vsel %vm45, %v185, 0
    %v194 = vsel %vm45, %v186, 0
    %196 = vmatpush.msra.mxu0 0.0
    %197 = vmatpush.msra.mxu0 0.0
    %198 = vmatpush.msra.mxu0 0.0
    %199 = vmatpush.msra.mxu0 0.0
    %200 = vmatpush.msra.mxu0 0.0
    %201 = vmatpush.msra.mxu0 0.0
    %202 = vmatpush.msra.mxu0 0.0
    %203 = vmatpush.msra.mxu0 0.0
    %204 = vmatpush.msra.mxu0 0.0
    %205 = vmatpush.msra.mxu0 0.0
    %206 = vmatpush.msra.mxu0 0.0
    %207 = vmatpush.msra.mxu0 0.0
    %208 = vmatpush.msra.mxu0 0.0
    %209 = vmatpush.msra.mxu0 0.0
    %210 = vmatpush.msra.mxu0 %v182
    %211 = vmatpush.msra.mxu0 %v181
    %212 = vmatmul.f32.gmra.mxu0 %v191
    %v213 = vpop.f32.mrf.mxu0
    %v214 = vadd.f32 %v183, %v213
    %215 = vmatmul.f32.gmra.mxu0 %v194
    %v216 = vpop.f32.mrf.mxu0
    %v217 = vadd.f32 %v184, %v216
    %218 = vdwg.mxu0
    %v219 = vadd.f32 %v187, %v214
    %v220 = vadd.f32 %v189, %v217
    %v221 = vxor.u32 %v219, 2147483648
    %v222 = vxor.u32 %v220, 2147483648
    %v223 = vmul.f32 %v221, 1.442695
    %v224 = vpow.pop %v223
    %v225 = vmul.f32 %v222, 1.442695
    %v226 = vpow.pop %v225
    %v227 = vadd.f32 %v224, 1.0
    %v228 = vadd.f32 %v226, 1.0
    %v229 = vrcp.pop %v227
    %v230 = vmul.f32 %v227, %v229
    %v231 = vsub.f32 1.0, %v230
    %v232 = vmul.f32 %v229, %v231
    %v233 = vadd.f32 %v229, %v232
    %vm234 = vweird.f32 %v227
    %vm235 = vweird.f32 %v229
    %vm236 = vmor %vm234, %vm235
    %v237 = vsel %vm236, %v229, %v233
    %v238 = vand.u32 2147483647, %v227
    %vm239 = vcmp.eq.f32.partialorder %v238, 8.507059e+37
    %v240 = vand.u32 %v227, 2147483648
    %v241 = vor.u32 1.1754944e-38, %v240
    %v242 = vsel %vm239, %v241, %v237
    %v243 = vmul.f32 1.0, %v242
    %v244 = vrcp.pop %v228
    %v245 = vmul.f32 %v228, %v244
    %v246 = vsub.f32 1.0, %v245
    %v247 = vmul.f32 %v244, %v246
    %v248 = vadd.f32 %v244, %v247
    %vm249 = vweird.f32 %v228
    %vm250 = vweird.f32 %v244
    %vm251 = vmor %vm249, %vm250
    %v252 = vsel %vm251, %v244, %v248
    %v253 = vand.u32 2147483647, %v228
    %vm254 = vcmp.eq.f32.partialorder %v253, 8.507059e+37
    %v255 = vand.u32 %v228, 2147483648
    %v256 = vor.u32 1.1754944e-38, %v255
    %v257 = vsel %vm254, %v256, %v252
    %v258 = vmul.f32 1.0, %v257
    %261 = vrot.lane.b32.xlu0 %v214, 96
    %v262 = vpop.permute.xlu0 %261
    %263 = vrot.lane.b32.xlu0 %v217, 96
    %v264 = vpop.permute.xlu0 %263
    %v267 = vmul.f32 %v243, %v262
    %v268 = vmul.f32 %v258, %v264
    %271 = vrot.lane.b32.xlu0 %v267, 32
    %v272 = vpop.permute.xlu0 %271
    %273 = vrot.lane.b32.xlu0 %v268, 32
    %v274 = vpop.permute.xlu0 %273
    %v277 = vadd.f32 %v187, %v272
    %v278 = vadd.f32 %v189, %v274
    %v279 = vtanh.pop %v277
    %v280 = vtanh.pop %v278
    %v281 = vsub.f32 1.0, %v243
    %v282 = vsub.f32 1.0, %v258
    %285 = vrot.lane.b32.xlu0 %v279, 112
    %v286 = vpop.permute.xlu0 %285
    %287 = vrot.lane.b32.xlu0 %v280, 112
    %v288 = vpop.permute.xlu0 %287
    %v291 = vmul.f32 %v281, %v286
    %v292 = vmul.f32 %v282, %v288
    %293 = vrot.lane.b32.xlu0 %v185, 16
    %v294 = vpop.permute.xlu0 %293
    %295 = vrot.lane.b32.xlu0 %v186, 16
    %v296 = vpop.permute.xlu0 %295
    %v299 = vmul.f32 %v243, %v294
    %v300 = vmul.f32 %v258, %v296
    %v301 = vadd.f32 %v291, %v299
    %v302 = vadd.f32 %v292, %v300
    %v303 = vld [vmem:[#allocation4] sm:$0xff]
    %305 = vrot.lane.b32.xlu0 %v301, 112
    %v306 = vpop.permute.xlu0 %305
    %v308 = vadd.f32 %v303, %v306
    %309 = vst.msk [vmem:[#allocation4] sm:$0xff] %vm45, %v308
    %s310 = scalar_lea.vmem [#allocation4], 56
    %v311 = vld [vmem:[%s310] sm:$0xff]
    %313 = vrot.lane.b32.xlu0 %v302, 112
    %v314 = vpop.permute.xlu0 %313
    %v316 = vadd.f32 %v311, %v314
    %317 = vst.msk [vmem:[%s310] sm:$0xff] %vm45, %v316
    %s318 = scalar_lea.vmem [#allocation2], 8
    %v319 = vld [vmem:[%s318] sm:$0xff]
    %s320 = scalar_lea.vmem [#allocation3], 48
    %v321 = vld [vmem:[%s320] sm:$0xff]
    %v322 = vsel %vm45, %v306, 0
    %v324 = vsel %vm45, %v314, 0
    %326 = vmatpush.msra.mxu0 0.0
    %327 = vmatpush.msra.mxu0 0.0
    %328 = vmatpush.msra.mxu0 0.0
    %329 = vmatpush.msra.mxu0 0.0
    %330 = vmatpush.msra.mxu0 0.0
    %331 = vmatpush.msra.mxu0 0.0
    %332 = vmatpush.msra.mxu0 0.0
    %333 = vmatpush.msra.mxu0 0.0
    %334 = vmatpush.msra.mxu0 0.0
    %335 = vmatpush.msra.mxu0 0.0
    %336 = vmatpush.msra.mxu0 0.0
    %337 = vmatpush.msra.mxu0 0.0
    %338 = vmatpush.msra.mxu0 0.0
    %339 = vmatpush.msra.mxu0 0.0
    %340 = vmatpush.msra.mxu0 %v182
    %341 = vmatpush.msra.mxu0 %v181
    %342 = vmatmul.f32.gmra.mxu0 %v322
    %v343 = vpop.f32.mrf.mxu0
    %v344 = vadd.f32 %v183, %v343
    %345 = vmatmul.f32.gmra.mxu0 %v324
    %v346 = vpop.f32.mrf.mxu0
    %v347 = vadd.f32 %v184, %v346
    %348 = vdwg.mxu0
    %v349 = vadd.f32 %v319, %v344
    %v350 = vadd.f32 %v321, %v347
    %v351 = vxor.u32 %v349, 2147483648
    %v352 = vxor.u32 %v350, 2147483648
    %v353 = vmul.f32 %v351, 1.442695
    %v354 = vpow.pop %v353
    %v355 = vmul.f32 %v352, 1.442695
    %v356 = vpow.pop %v355
    %v357 = vadd.f32 %v354, 1.0
    %v358 = vadd.f32 %v356, 1.0
    %v359 = vrcp.pop %v357
    %v360 = vmul.f32 %v357, %v359
    %v361 = vsub.f32 1.0, %v360
    %v362 = vmul.f32 %v359, %v361
    %v363 = vadd.f32 %v359, %v362
    %vm364 = vweird.f32 %v357
    %vm365 = vweird.f32 %v359
    %vm366 = vmor %vm364, %vm365
    %v367 = vsel %vm366, %v359, %v363
    %v368 = vand.u32 2147483647, %v357
    %vm369 = vcmp.eq.f32.partialorder %v368, 8.507059e+37
    %v370 = vand.u32 %v357, 2147483648
    %v371 = vor.u32 1.1754944e-38, %v370
    %v372 = vsel %vm369, %v371, %v367
    %v373 = vmul.f32 1.0, %v372
    %v374 = vrcp.pop %v358
    %v375 = vmul.f32 %v358, %v374
    %v376 = vsub.f32 1.0, %v375
    %v377 = vmul.f32 %v374, %v376
    %v378 = vadd.f32 %v374, %v377
    %vm379 = vweird.f32 %v358
    %vm380 = vweird.f32 %v374
    %vm381 = vmor %vm379, %vm380
    %v382 = vsel %vm381, %v374, %v378
    %v383 = vand.u32 2147483647, %v358
    %vm384 = vcmp.eq.f32.partialorder %v383, 8.507059e+37
    %v385 = vand.u32 %v358, 2147483648
    %v386 = vor.u32 1.1754944e-38, %v385
    %v387 = vsel %vm384, %v386, %v382
    %v388 = vmul.f32 1.0, %v387
    %391 = vrot.lane.b32.xlu0 %v344, 96
    %v392 = vpop.permute.xlu0 %391
    %393 = vrot.lane.b32.xlu0 %v347, 96
    %v394 = vpop.permute.xlu0 %393
    %v397 = vmul.f32 %v373, %v392
    %v398 = vmul.f32 %v388, %v394
    %401 = vrot.lane.b32.xlu0 %v397, 32
    %v402 = vpop.permute.xlu0 %401
    %403 = vrot.lane.b32.xlu0 %v398, 32
    %v404 = vpop.permute.xlu0 %403
    %v407 = vadd.f32 %v319, %v402
    %v408 = vadd.f32 %v321, %v404
    %v409 = vtanh.pop %v407
    %v410 = vtanh.pop %v408
    %v411 = vsub.f32 1.0, %v373
    %v412 = vsub.f32 1.0, %v388
    %415 = vrot.lane.b32.xlu0 %v409, 112
    %v416 = vpop.permute.xlu0 %415
    %417 = vrot.lane.b32.xlu0 %v410, 112
    %v418 = vpop.permute.xlu0 %417
    %v421 = vmul.f32 %v411, %v416
    %v422 = vmul.f32 %v412, %v418
    %v423 = vmul.f32 %v373, %v301
    %v424 = vmul.f32 %v388, %v302
    %v425 = vadd.f32 %v421, %v423
    %v426 = vadd.f32 %v422, %v424
    %s427 = scalar_lea.vmem [#allocation4], 8
    %v428 = vld [vmem:[%s427] sm:$0xff]
    %430 = vrot.lane.b32.xlu0 %v425, 112
    %v431 = vpop.permute.xlu0 %430
    %v433 = vadd.f32 %v428, %v431
    %434 = vst.msk [vmem:[%s427] sm:$0xff] %vm45, %v433
    %s435 = scalar_lea.vmem [#allocation4], 48
    %v436 = vld [vmem:[%s435] sm:$0xff]
    %438 = vrot.lane.b32.xlu0 %v426, 112
    %v439 = vpop.permute.xlu0 %438
    %v441 = vadd.f32 %v436, %v439
    %442 = vst.msk [vmem:[%s435] sm:$0xff] %vm45, %v441
    %s443 = scalar_lea.vmem [#allocation2], 16
    %v444 = vld [vmem:[%s443] sm:$0xff]
    %s445 = scalar_lea.vmem [#allocation3], 40
    %v446 = vld [vmem:[%s445] sm:$0xff]
    %v447 = vsel %vm45, %v431, 0
    %v449 = vsel %vm45, %v439, 0
    %451 = vmatpush.msra.mxu0 0.0
    %452 = vmatpush.msra.mxu0 0.0
    %453 = vmatpush.msra.mxu0 0.0
    %454 = vmatpush.msra.mxu0 0.0
    %455 = vmatpush.msra.mxu0 0.0
    %456 = vmatpush.msra.mxu0 0.0
    %457 = vmatpush.msra.mxu0 0.0
    %458 = vmatpush.msra.mxu0 0.0
    %459 = vmatpush.msra.mxu0 0.0
    %460 = vmatpush.msra.mxu0 0.0
    %461 = vmatpush.msra.mxu0 0.0
    %462 = vmatpush.msra.mxu0 0.0
    %463 = vmatpush.msra.mxu0 0.0
    %464 = vmatpush.msra.mxu0 0.0
    %465 = vmatpush.msra.mxu0 %v182
    %466 = vmatpush.msra.mxu0 %v181
    %467 = vmatmul.f32.gmra.mxu0 %v447
    %v468 = vpop.f32.mrf.mxu0
    %v469 = vadd.f32 %v183, %v468
    %470 = vmatmul.f32.gmra.mxu0 %v449
    %v471 = vpop.f32.mrf.mxu0
    %v472 = vadd.f32 %v184, %v471
    %473 = vdwg.mxu0
    %v474 = vadd.f32 %v444, %v469
    %v475 = vadd.f32 %v446, %v472
    %v476 = vxor.u32 %v474, 2147483648
    %v477 = vxor.u32 %v475, 2147483648
    %v478 = vmul.f32 %v476, 1.442695
    %v479 = vpow.pop %v478
    %v480 = vmul.f32 %v477, 1.442695
    %v481 = vpow.pop %v480
    %v482 = vadd.f32 %v479, 1.0
    %v483 = vadd.f32 %v481, 1.0
    %v484 = vrcp.pop %v482
    %v485 = vmul.f32 %v482, %v484
    %v486 = vsub.f32 1.0, %v485
    %v487 = vmul.f32 %v484, %v486
    %v488 = vadd.f32 %v484, %v487
    %vm489 = vweird.f32 %v482
    %vm490 = vweird.f32 %v484
    %vm491 = vmor %vm489, %vm490
    %v492 = vsel %vm491, %v484, %v488
    %v493 = vand.u32 2147483647, %v482
    %vm494 = vcmp.eq.f32.partialorder %v493, 8.507059e+37
    %v495 = vand.u32 %v482, 2147483648
    %v496 = vor.u32 1.1754944e-38, %v495
    %v497 = vsel %vm494, %v496, %v492
    %v498 = vmul.f32 1.0, %v497
    %v499 = vrcp.pop %v483
    %v500 = vmul.f32 %v483, %v499
    %v501 = vsub.f32 1.0, %v500
    %v502 = vmul.f32 %v499, %v501
    %v503 = vadd.f32 %v499, %v502
    %vm504 = vweird.f32 %v483
    %vm505 = vweird.f32 %v499
    %vm506 = vmor %vm504, %vm505
    %v507 = vsel %vm506, %v499, %v503
    %v508 = vand.u32 2147483647, %v483
    %vm509 = vcmp.eq.f32.partialorder %v508, 8.507059e+37
    %v510 = vand.u32 %v483, 2147483648
    %v511 = vor.u32 1.1754944e-38, %v510
    %v512 = vsel %vm509, %v511, %v507
    %v513 = vmul.f32 1.0, %v512
    %516 = vrot.lane.b32.xlu0 %v469, 96
    %v517 = vpop.permute.xlu0 %516
    %518 = vrot.lane.b32.xlu0 %v472, 96
    %v519 = vpop.permute.xlu0 %518
    %v522 = vmul.f32 %v498, %v517
    %v523 = vmul.f32 %v513, %v519
    %526 = vrot.lane.b32.xlu0 %v522, 32
    %v527 = vpop.permute.xlu0 %526
    %528 = vrot.lane.b32.xlu0 %v523, 32
    %v529 = vpop.permute.xlu0 %528
    %v532 = vadd.f32 %v444, %v527
    %v533 = vadd.f32 %v446, %v529
    %v534 = vtanh.pop %v532
    %v535 = vtanh.pop %v533
    %v536 = vsub.f32 1.0, %v498
    %v537 = vsub.f32 1.0, %v513
    %540 = vrot.lane.b32.xlu0 %v534, 112
    %v541 = vpop.permute.xlu0 %540
    %542 = vrot.lane.b32.xlu0 %v535, 112
    %v543 = vpop.permute.xlu0 %542
    %v546 = vmul.f32 %v536, %v541
    %v547 = vmul.f32 %v537, %v543
    %v548 = vmul.f32 %v498, %v425
    %v549 = vmul.f32 %v513, %v426
    %v550 = vadd.f32 %v546, %v548
    %v551 = vadd.f32 %v547, %v549
    %s552 = scalar_lea.vmem [#allocation4], 16
    %v553 = vld [vmem:[%s552] sm:$0xff]
    %555 = vrot.lane.b32.xlu0 %v550, 112
    %v556 = vpop.permute.xlu0 %555
    %v558 = vadd.f32 %v553, %v556
    %559 = vst.msk [vmem:[%s552] sm:$0xff] %vm45, %v558
    %s560 = scalar_lea.vmem [#allocation4], 40
    %v561 = vld [vmem:[%s560] sm:$0xff]
    %563 = vrot.lane.b32.xlu0 %v551, 112
    %v564 = vpop.permute.xlu0 %563
    %v566 = vadd.f32 %v561, %v564
    %567 = vst.msk [vmem:[%s560] sm:$0xff] %vm45, %v566
    %s568 = scalar_lea.vmem [#allocation2], 24
    %v569 = vld [vmem:[%s568] sm:$0xff]
    %s570 = scalar_lea.vmem [#allocation3], 32
    %v571 = vld [vmem:[%s570] sm:$0xff]
    %v572 = vsel %vm45, %v556, 0
    %v574 = vsel %vm45, %v564, 0
    %576 = vmatpush.msra.mxu0 0.0
    %577 = vmatpush.msra.mxu0 0.0
    %578 = vmatpush.msra.mxu0 0.0
    %579 = vmatpush.msra.mxu0 0.0
    %580 = vmatpush.msra.mxu0 0.0
    %581 = vmatpush.msra.mxu0 0.0
    %582 = vmatpush.msra.mxu0 0.0
    %583 = vmatpush.msra.mxu0 0.0
    %584 = vmatpush.msra.mxu0 0.0
    %585 = vmatpush.msra.mxu0 0.0
    %586 = vmatpush.msra.mxu0 0.0
    %587 = vmatpush.msra.mxu0 0.0
    %588 = vmatpush.msra.mxu0 0.0
    %589 = vmatpush.msra.mxu0 0.0
    %590 = vmatpush.msra.mxu0 %v182
    %591 = vmatpush.msra.mxu0 %v181
    %592 = vmatmul.f32.gmra.mxu0 %v572
    %v593 = vpop.f32.mrf.mxu0
    %v594 = vadd.f32 %v183, %v593
    %595 = vmatmul.f32.gmra.mxu0 %v574
    %v596 = vpop.f32.mrf.mxu0
    %v597 = vadd.f32 %v184, %v596
    %598 = vdwg.mxu0
    %v599 = vadd.f32 %v569, %v594
    %v600 = vadd.f32 %v571, %v597
    %v601 = vxor.u32 %v599, 2147483648
    %v602 = vxor.u32 %v600, 2147483648
    %v603 = vmul.f32 %v601, 1.442695
    %v604 = vpow.pop %v603
    %v605 = vmul.f32 %v602, 1.442695
    %v606 = vpow.pop %v605
    %v607 = vadd.f32 %v604, 1.0
    %v608 = vadd.f32 %v606, 1.0
    %v609 = vrcp.pop %v607
    %v610 = vmul.f32 %v607, %v609
    %v611 = vsub.f32 1.0, %v610
    %v612 = vmul.f32 %v609, %v611
    %v613 = vadd.f32 %v609, %v612
    %vm614 = vweird.f32 %v607
    %vm615 = vweird.f32 %v609
    %vm616 = vmor %vm614, %vm615
    %v617 = vsel %vm616, %v609, %v613
    %v618 = vand.u32 2147483647, %v607
    %vm619 = vcmp.eq.f32.partialorder %v618, 8.507059e+37
    %v620 = vand.u32 %v607, 2147483648
    %v621 = vor.u32 1.1754944e-38, %v620
    %v622 = vsel %vm619, %v621, %v617
    %v623 = vmul.f32 1.0, %v622
    %v624 = vrcp.pop %v608
    %v625 = vmul.f32 %v608, %v624
    %v626 = vsub.f32 1.0, %v625
    %v627 = vmul.f32 %v624, %v626
    %v628 = vadd.f32 %v624, %v627
    %vm629 = vweird.f32 %v608
    %vm630 = vweird.f32 %v624
    %vm631 = vmor %vm629, %vm630
    %v632 = vsel %vm631, %v624, %v628
    %v633 = vand.u32 2147483647, %v608
    %vm634 = vcmp.eq.f32.partialorder %v633, 8.507059e+37
    %v635 = vand.u32 %v608, 2147483648
    %v636 = vor.u32 1.1754944e-38, %v635
    %v637 = vsel %vm634, %v636, %v632
    %v638 = vmul.f32 1.0, %v637
    %641 = vrot.lane.b32.xlu0 %v594, 96
    %v642 = vpop.permute.xlu0 %641
    %643 = vrot.lane.b32.xlu0 %v597, 96
    %v644 = vpop.permute.xlu0 %643
    %v647 = vmul.f32 %v623, %v642
    %v648 = vmul.f32 %v638, %v644
    %651 = vrot.lane.b32.xlu0 %v647, 32
    %v652 = vpop.permute.xlu0 %651
    %653 = vrot.lane.b32.xlu0 %v648, 32
    %v654 = vpop.permute.xlu0 %653
    %v657 = vadd.f32 %v569, %v652
    %v658 = vadd.f32 %v571, %v654
    %v659 = vtanh.pop %v657
    %v660 = vtanh.pop %v658
    %v661 = vsub.f32 1.0, %v623
    %v662 = vsub.f32 1.0, %v638
    %665 = vrot.lane.b32.xlu0 %v659, 112
    %v666 = vpop.permute.xlu0 %665
    %667 = vrot.lane.b32.xlu0 %v660, 112
    %v668 = vpop.permute.xlu0 %667
    %v671 = vmul.f32 %v661, %v666
    %v672 = vmul.f32 %v662, %v668
    %v673 = vmul.f32 %v623, %v550
    %v674 = vmul.f32 %v638, %v551
    %v675 = vadd.f32 %v671, %v673
    %v676 = vadd.f32 %v672, %v674
    %s677 = scalar_lea.vmem [#allocation4], 24
    %v678 = vld [vmem:[%s677] sm:$0xff]
    %680 = vrot.lane.b32.xlu0 %v675, 112
    %v681 = vpop.permute.xlu0 %680
    %v683 = vadd.f32 %v678, %v681
    %684 = vst.msk [vmem:[%s677] sm:$0xff] %vm45, %v683
    %s685 = scalar_lea.vmem [#allocation4], 32
    %v686 = vld [vmem:[%s685] sm:$0xff]
    %688 = vrot.lane.b32.xlu0 %v676, 112
    %v689 = vpop.permute.xlu0 %688
    %v691 = vadd.f32 %v686, %v689
    %692 = vst.msk [vmem:[%s685] sm:$0xff] %vm45, %v691
    %s693 = scalar_lea.vmem [#allocation2], 32
    %v694 = vld [vmem:[%s693] sm:$0xff]
    %s695 = scalar_lea.vmem [#allocation3], 24
    %v696 = vld [vmem:[%s695] sm:$0xff]
    %v697 = vsel %vm45, %v681, 0
    %v699 = vsel %vm45, %v689, 0
    %701 = vmatpush.msra.mxu0 0.0
    %702 = vmatpush.msra.mxu0 0.0
    %703 = vmatpush.msra.mxu0 0.0
    %704 = vmatpush.msra.mxu0 0.0
    %705 = vmatpush.msra.mxu0 0.0
    %706 = vmatpush.msra.mxu0 0.0
    %707 = vmatpush.msra.mxu0 0.0
    %708 = vmatpush.msra.mxu0 0.0
    %709 = vmatpush.msra.mxu0 0.0
    %710 = vmatpush.msra.mxu0 0.0
    %711 = vmatpush.msra.mxu0 0.0
    %712 = vmatpush.msra.mxu0 0.0
    %713 = vmatpush.msra.mxu0 0.0
    %714 = vmatpush.msra.mxu0 0.0
    %715 = vmatpush.msra.mxu0 %v182
    %716 = vmatpush.msra.mxu0 %v181
    %717 = vmatmul.f32.gmra.mxu0 %v697
    %v718 = vpop.f32.mrf.mxu0
    %v719 = vadd.f32 %v183, %v718
    %720 = vmatmul.f32.gmra.mxu0 %v699
    %v721 = vpop.f32.mrf.mxu0
    %v722 = vadd.f32 %v184, %v721
    %723 = vdwg.mxu0
    %v724 = vadd.f32 %v694, %v719
    %v725 = vadd.f32 %v696, %v722
    %v726 = vxor.u32 %v724, 2147483648
    %v727 = vxor.u32 %v725, 2147483648
    %v728 = vmul.f32 %v726, 1.442695
    %v729 = vpow.pop %v728
    %v730 = vmul.f32 %v727, 1.442695
    %v731 = vpow.pop %v730
    %v732 = vadd.f32 %v729, 1.0
    %v733 = vadd.f32 %v731, 1.0
    %v734 = vrcp.pop %v732
    %v735 = vmul.f32 %v732, %v734
    %v736 = vsub.f32 1.0, %v735
    %v737 = vmul.f32 %v734, %v736
    %v738 = vadd.f32 %v734, %v737
    %vm739 = vweird.f32 %v732
    %vm740 = vweird.f32 %v734
    %vm741 = vmor %vm739, %vm740
    %v742 = vsel %vm741, %v734, %v738
    %v743 = vand.u32 2147483647, %v732
    %vm744 = vcmp.eq.f32.partialorder %v743, 8.507059e+37
    %v745 = vand.u32 %v732, 2147483648
    %v746 = vor.u32 1.1754944e-38, %v745
    %v747 = vsel %vm744, %v746, %v742
    %v748 = vmul.f32 1.0, %v747
    %v749 = vrcp.pop %v733
    %v750 = vmul.f32 %v733, %v749
    %v751 = vsub.f32 1.0, %v750
    %v752 = vmul.f32 %v749, %v751
    %v753 = vadd.f32 %v749, %v752
    %vm754 = vweird.f32 %v733
    %vm755 = vweird.f32 %v749
    %vm756 = vmor %vm754, %vm755
    %v757 = vsel %vm756, %v749, %v753
    %v758 = vand.u32 2147483647, %v733
    %vm759 = vcmp.eq.f32.partialorder %v758, 8.507059e+37
    %v760 = vand.u32 %v733, 2147483648
    %v761 = vor.u32 1.1754944e-38, %v760
    %v762 = vsel %vm759, %v761, %v757
    %v763 = vmul.f32 1.0, %v762
    %766 = vrot.lane.b32.xlu0 %v719, 96
    %v767 = vpop.permute.xlu0 %766
    %768 = vrot.lane.b32.xlu0 %v722, 96
    %v769 = vpop.permute.xlu0 %768
    %v772 = vmul.f32 %v748, %v767
    %v773 = vmul.f32 %v763, %v769
    %776 = vrot.lane.b32.xlu0 %v772, 32
    %v777 = vpop.permute.xlu0 %776
    %778 = vrot.lane.b32.xlu0 %v773, 32
    %v779 = vpop.permute.xlu0 %778
    %v782 = vadd.f32 %v694, %v777
    %v783 = vadd.f32 %v696, %v779
    %v784 = vtanh.pop %v782
    %v785 = vtanh.pop %v783
    %v786 = vsub.f32 1.0, %v748
    %v787 = vsub.f32 1.0, %v763
    %790 = vrot.lane.b32.xlu0 %v784, 112
    %v791 = vpop.permute.xlu0 %790
    %792 = vrot.lane.b32.xlu0 %v785, 112
    %v793 = vpop.permute.xlu0 %792
    %v796 = vmul.f32 %v786, %v791
    %v797 = vmul.f32 %v787, %v793
    %v798 = vmul.f32 %v748, %v675
    %v799 = vmul.f32 %v763, %v676
    %v800 = vadd.f32 %v796, %v798
    %v801 = vadd.f32 %v797, %v799
    %v802 = vld [vmem:[%s685] sm:$0xff]
    %804 = vrot.lane.b32.xlu0 %v800, 112
    %v805 = vpop.permute.xlu0 %804
    %v807 = vadd.f32 %v802, %v805
    %808 = vst.msk [vmem:[%s685] sm:$0xff] %vm45, %v807
    %v809 = vld [vmem:[%s677] sm:$0xff]
    %811 = vrot.lane.b32.xlu0 %v801, 112
    %v812 = vpop.permute.xlu0 %811
    %v814 = vadd.f32 %v809, %v812
    %815 = vst.msk [vmem:[%s677] sm:$0xff] %vm45, %v814
    %s816 = scalar_lea.vmem [#allocation2], 40
    %v817 = vld [vmem:[%s816] sm:$0xff]
    %s818 = scalar_lea.vmem [#allocation3], 16
    %v819 = vld [vmem:[%s818] sm:$0xff]
    %v820 = vsel %vm45, %v805, 0
    %v822 = vsel %vm45, %v812, 0
    %824 = vmatpush.msra.mxu0 0.0
    %825 = vmatpush.msra.mxu0 0.0
    %826 = vmatpush.msra.mxu0 0.0
    %827 = vmatpush.msra.mxu0 0.0
    %828 = vmatpush.msra.mxu0 0.0
    %829 = vmatpush.msra.mxu0 0.0
    %830 = vmatpush.msra.mxu0 0.0
    %831 = vmatpush.msra.mxu0 0.0
    %832 = vmatpush.msra.mxu0 0.0
    %833 = vmatpush.msra.mxu0 0.0
    %834 = vmatpush.msra.mxu0 0.0
    %835 = vmatpush.msra.mxu0 0.0
    %836 = vmatpush.msra.mxu0 0.0
    %837 = vmatpush.msra.mxu0 0.0
    %838 = vmatpush.msra.mxu0 %v182
    %839 = vmatpush.msra.mxu0 %v181
    %840 = vmatmul.f32.gmra.mxu0 %v820
    %v841 = vpop.f32.mrf.mxu0
    %v842 = vadd.f32 %v183, %v841
    %843 = vmatmul.f32.gmra.mxu0 %v822
    %v844 = vpop.f32.mrf.mxu0
    %v845 = vadd.f32 %v184, %v844
    %846 = vdwg.mxu0
    %v847 = vadd.f32 %v817, %v842
    %v848 = vadd.f32 %v819, %v845
    %v849 = vxor.u32 %v847, 2147483648
    %v850 = vxor.u32 %v848, 2147483648
    %v851 = vmul.f32 %v849, 1.442695
    %v852 = vpow.pop %v851
    %v853 = vmul.f32 %v850, 1.442695
    %v854 = vpow.pop %v853
    %v855 = vadd.f32 %v852, 1.0
    %v856 = vadd.f32 %v854, 1.0
    %v857 = vrcp.pop %v855
    %v858 = vmul.f32 %v855, %v857
    %v859 = vsub.f32 1.0, %v858
    %v860 = vmul.f32 %v857, %v859
    %v861 = vadd.f32 %v857, %v860
    %vm862 = vweird.f32 %v855
    %vm863 = vweird.f32 %v857
    %vm864 = vmor %vm862, %vm863
    %v865 = vsel %vm864, %v857, %v861
    %v866 = vand.u32 2147483647, %v855
    %vm867 = vcmp.eq.f32.partialorder %v866, 8.507059e+37
    %v868 = vand.u32 %v855, 2147483648
    %v869 = vor.u32 1.1754944e-38, %v868
    %v870 = vsel %vm867, %v869, %v865
    %v871 = vmul.f32 1.0, %v870
    %v872 = vrcp.pop %v856
    %v873 = vmul.f32 %v856, %v872
    %v874 = vsub.f32 1.0, %v873
    %v875 = vmul.f32 %v872, %v874
    %v876 = vadd.f32 %v872, %v875
    %vm877 = vweird.f32 %v856
    %vm878 = vweird.f32 %v872
    %vm879 = vmor %vm877, %vm878
    %v880 = vsel %vm879, %v872, %v876
    %v881 = vand.u32 2147483647, %v856
    %vm882 = vcmp.eq.f32.partialorder %v881, 8.507059e+37
    %v883 = vand.u32 %v856, 2147483648
    %v884 = vor.u32 1.1754944e-38, %v883
    %v885 = vsel %vm882, %v884, %v880
    %v886 = vmul.f32 1.0, %v885
    %889 = vrot.lane.b32.xlu0 %v842, 96
    %v890 = vpop.permute.xlu0 %889
    %891 = vrot.lane.b32.xlu0 %v845, 96
    %v892 = vpop.permute.xlu0 %891
    %v895 = vmul.f32 %v871, %v890
    %v896 = vmul.f32 %v886, %v892
    %899 = vrot.lane.b32.xlu0 %v895, 32
    %v900 = vpop.permute.xlu0 %899
    %901 = vrot.lane.b32.xlu0 %v896, 32
    %v902 = vpop.permute.xlu0 %901
    %v905 = vadd.f32 %v817, %v900
    %v906 = vadd.f32 %v819, %v902
    %v907 = vtanh.pop %v905
    %v908 = vtanh.pop %v906
    %v909 = vsub.f32 1.0, %v871
    %v910 = vsub.f32 1.0, %v886
    %913 = vrot.lane.b32.xlu0 %v907, 112
    %v914 = vpop.permute.xlu0 %913
    %915 = vrot.lane.b32.xlu0 %v908, 112
    %v916 = vpop.permute.xlu0 %915
    %v919 = vmul.f32 %v909, %v914
    %v920 = vmul.f32 %v910, %v916
    %v921 = vmul.f32 %v871, %v800
    %v922 = vmul.f32 %v886, %v801
    %v923 = vadd.f32 %v919, %v921
    %v924 = vadd.f32 %v920, %v922
    %v925 = vld [vmem:[%s560] sm:$0xff]
    %927 = vrot.lane.b32.xlu0 %v923, 112
    %v928 = vpop.permute.xlu0 %927
    %v930 = vadd.f32 %v925, %v928
    %931 = vst.msk [vmem:[%s560] sm:$0xff] %vm45, %v930
    %v932 = vld [vmem:[%s552] sm:$0xff]
    %934 = vrot.lane.b32.xlu0 %v924, 112
    %v935 = vpop.permute.xlu0 %934
    %v937 = vadd.f32 %v932, %v935
    %938 = vst.msk [vmem:[%s552] sm:$0xff] %vm45, %v937
    %s939 = scalar_lea.vmem [#allocation2], 48
    %v940 = vld [vmem:[%s939] sm:$0xff]
    %s941 = scalar_lea.vmem [#allocation3], 8
    %v942 = vld [vmem:[%s941] sm:$0xff]
    %v943 = vsel %vm45, %v928, 0
    %v945 = vsel %vm45, %v935, 0
    %947 = vmatpush.msra.mxu0 0.0
    %948 = vmatpush.msra.mxu0 0.0
    %949 = vmatpush.msra.mxu0 0.0
    %950 = vmatpush.msra.mxu0 0.0
    %951 = vmatpush.msra.mxu0 0.0
    %952 = vmatpush.msra.mxu0 0.0
    %953 = vmatpush.msra.mxu0 0.0
    %954 = vmatpush.msra.mxu0 0.0
    %955 = vmatpush.msra.mxu0 0.0
    %956 = vmatpush.msra.mxu0 0.0
    %957 = vmatpush.msra.mxu0 0.0
    %958 = vmatpush.msra.mxu0 0.0
    %959 = vmatpush.msra.mxu0 0.0
    %960 = vmatpush.msra.mxu0 0.0
    %961 = vmatpush.msra.mxu0 %v182
    %962 = vmatpush.msra.mxu0 %v181
    %963 = vmatmul.f32.gmra.mxu0 %v943
    %v964 = vpop.f32.mrf.mxu0
    %v965 = vadd.f32 %v183, %v964
    %966 = vmatmul.f32.gmra.mxu0 %v945
    %v967 = vpop.f32.mrf.mxu0
    %v968 = vadd.f32 %v184, %v967
    %969 = vdwg.mxu0
    %v970 = vadd.f32 %v940, %v965
    %v971 = vadd.f32 %v942, %v968
    %v972 = vxor.u32 %v970, 2147483648
    %v973 = vxor.u32 %v971, 2147483648
    %v974 = vmul.f32 %v972, 1.442695
    %v975 = vpow.pop %v974
    %v976 = vmul.f32 %v973, 1.442695
    %v977 = vpow.pop %v976
    %v978 = vadd.f32 %v975, 1.0
    %v979 = vadd.f32 %v977, 1.0
    %v980 = vrcp.pop %v978
    %v981 = vmul.f32 %v978, %v980
    %v982 = vsub.f32 1.0, %v981
    %v983 = vmul.f32 %v980, %v982
    %v984 = vadd.f32 %v980, %v983
    %vm985 = vweird.f32 %v978
    %vm986 = vweird.f32 %v980
    %vm987 = vmor %vm985, %vm986
    %v988 = vsel %vm987, %v980, %v984
    %v989 = vand.u32 2147483647, %v978
    %vm990 = vcmp.eq.f32.partialorder %v989, 8.507059e+37
    %v991 = vand.u32 %v978, 2147483648
    %v992 = vor.u32 1.1754944e-38, %v991
    %v993 = vsel %vm990, %v992, %v988
    %v994 = vmul.f32 1.0, %v993
    %v995 = vrcp.pop %v979
    %v996 = vmul.f32 %v979, %v995
    %v997 = vsub.f32 1.0, %v996
    %v998 = vmul.f32 %v995, %v997
    %v999 = vadd.f32 %v995, %v998
    %vm1000 = vweird.f32 %v979
    %vm1001 = vweird.f32 %v995
    %vm1002 = vmor %vm1000, %vm1001
    %v1003 = vsel %vm1002, %v995, %v999
    %v1004 = vand.u32 2147483647, %v979
    %vm1005 = vcmp.eq.f32.partialorder %v1004, 8.507059e+37
    %v1006 = vand.u32 %v979, 2147483648
    %v1007 = vor.u32 1.1754944e-38, %v1006
    %v1008 = vsel %vm1005, %v1007, %v1003
    %v1009 = vmul.f32 1.0, %v1008
    %1012 = vrot.lane.b32.xlu0 %v965, 96
    %v1013 = vpop.permute.xlu0 %1012
    %1014 = vrot.lane.b32.xlu0 %v968, 96
    %v1015 = vpop.permute.xlu0 %1014
    %v1018 = vmul.f32 %v994, %v1013
    %v1019 = vmul.f32 %v1009, %v1015
    %1022 = vrot.lane.b32.xlu0 %v1018, 32
    %v1023 = vpop.permute.xlu0 %1022
    %1024 = vrot.lane.b32.xlu0 %v1019, 32
    %v1025 = vpop.permute.xlu0 %1024
    %v1028 = vadd.f32 %v940, %v1023
    %v1029 = vadd.f32 %v942, %v1025
    %v1030 = vtanh.pop %v1028
    %v1031 = vtanh.pop %v1029
    %v1032 = vsub.f32 1.0, %v994
    %v1033 = vsub.f32 1.0, %v1009
    %1036 = vrot.lane.b32.xlu0 %v1030, 112
    %v1037 = vpop.permute.xlu0 %1036
    %1038 = vrot.lane.b32.xlu0 %v1031, 112
    %v1039 = vpop.permute.xlu0 %1038
    %v1042 = vmul.f32 %v1032, %v1037
    %v1043 = vmul.f32 %v1033, %v1039
    %v1044 = vmul.f32 %v994, %v923
    %v1045 = vmul.f32 %v1009, %v924
    %v1046 = vadd.f32 %v1042, %v1044
    %v1047 = vadd.f32 %v1043, %v1045
    %v1048 = vld [vmem:[%s435] sm:$0xff]
    %1050 = vrot.lane.b32.xlu0 %v1046, 112
    %v1051 = vpop.permute.xlu0 %1050
    %v1053 = vadd.f32 %v1048, %v1051
    %1054 = vst.msk [vmem:[%s435] sm:$0xff] %vm45, %v1053
    %v1055 = vld [vmem:[%s427] sm:$0xff]
    %1057 = vrot.lane.b32.xlu0 %v1047, 112
    %v1058 = vpop.permute.xlu0 %1057
    %v1060 = vadd.f32 %v1055, %v1058
    %1061 = vst.msk [vmem:[%s427] sm:$0xff] %vm45, %v1060
    %s1062 = scalar_lea.vmem [#allocation2], 56
    %v1063 = vld [vmem:[%s1062] sm:$0xff]
    %v1064 = vld [vmem:[#allocation3] sm:$0xff]
    %v1065 = vsel %vm45, %v1051, 0
    %v1067 = vsel %vm45, %v1058, 0
    %1069 = vmatpush.msra.mxu0 0.0
    %1070 = vmatpush.msra.mxu0 0.0
    %1071 = vmatpush.msra.mxu0 0.0
    %1072 = vmatpush.msra.mxu0 0.0
    %1073 = vmatpush.msra.mxu0 0.0
    %1074 = vmatpush.msra.mxu0 0.0
    %1075 = vmatpush.msra.mxu0 0.0
    %1076 = vmatpush.msra.mxu0 0.0
    %1077 = vmatpush.msra.mxu0 0.0
    %1078 = vmatpush.msra.mxu0 0.0
    %1079 = vmatpush.msra.mxu0 0.0
    %1080 = vmatpush.msra.mxu0 0.0
    %1081 = vmatpush.msra.mxu0 0.0
    %1082 = vmatpush.msra.mxu0 0.0
    %1083 = vmatpush.msra.mxu0 %v182
    %1084 = vmatpush.msra.mxu0 %v181
    %1085 = vmatmul.f32.gmra.mxu0 %v1065
    %v1086 = vpop.f32.mrf.mxu0
    %v1087 = vadd.f32 %v183, %v1086
    %1088 = vmatmul.f32.gmra.mxu0 %v1067
    %v1089 = vpop.f32.mrf.mxu0
    %v1090 = vadd.f32 %v184, %v1089
    %1091 = vdwg.mxu0
    %v1092 = vadd.f32 %v1063, %v1087
    %v1093 = vadd.f32 %v1064, %v1090
    %v1094 = vxor.u32 %v1092, 2147483648
    %v1095 = vxor.u32 %v1093, 2147483648
    %v1096 = vmul.f32 %v1094, 1.442695
    %v1097 = vpow.pop %v1096
    %v1098 = vmul.f32 %v1095, 1.442695
    %v1099 = vpow.pop %v1098
    %v1100 = vadd.f32 %v1097, 1.0
    %v1101 = vadd.f32 %v1099, 1.0
    %v1102 = vrcp.pop %v1100
    %v1103 = vmul.f32 %v1100, %v1102
    %v1104 = vsub.f32 1.0, %v1103
    %v1105 = vmul.f32 %v1102, %v1104
    %v1106 = vadd.f32 %v1102, %v1105
    %vm1107 = vweird.f32 %v1100
    %vm1108 = vweird.f32 %v1102
    %vm1109 = vmor %vm1107, %vm1108
    %v1110 = vsel %vm1109, %v1102, %v1106
    %v1111 = vand.u32 2147483647, %v1100
    %vm1112 = vcmp.eq.f32.partialorder %v1111, 8.507059e+37
    %v1113 = vand.u32 %v1100, 2147483648
    %v1114 = vor.u32 1.1754944e-38, %v1113
    %v1115 = vsel %vm1112, %v1114, %v1110
    %v1116 = vmul.f32 1.0, %v1115
    %v1117 = vrcp.pop %v1101
    %v1118 = vmul.f32 %v1101, %v1117
    %v1119 = vsub.f32 1.0, %v1118
    %v1120 = vmul.f32 %v1117, %v1119
    %v1121 = vadd.f32 %v1117, %v1120
    %vm1122 = vweird.f32 %v1101
    %vm1123 = vweird.f32 %v1117
    %vm1124 = vmor %vm1122, %vm1123
    %v1125 = vsel %vm1124, %v1117, %v1121
    %v1126 = vand.u32 2147483647, %v1101
    %vm1127 = vcmp.eq.f32.partialorder %v1126, 8.507059e+37
    %v1128 = vand.u32 %v1101, 2147483648
    %v1129 = vor.u32 1.1754944e-38, %v1128
    %v1130 = vsel %vm1127, %v1129, %v1125
    %v1131 = vmul.f32 1.0, %v1130
    %1134 = vrot.lane.b32.xlu0 %v1087, 96
    %v1135 = vpop.permute.xlu0 %1134
    %1136 = vrot.lane.b32.xlu0 %v1090, 96
    %v1137 = vpop.permute.xlu0 %1136
    %v1140 = vmul.f32 %v1116, %v1135
    %v1141 = vmul.f32 %v1131, %v1137
    %1144 = vrot.lane.b32.xlu0 %v1140, 32
    %v1145 = vpop.permute.xlu0 %1144
    %1146 = vrot.lane.b32.xlu0 %v1141, 32
    %v1147 = vpop.permute.xlu0 %1146
    %v1150 = vadd.f32 %v1063, %v1145
    %v1151 = vadd.f32 %v1064, %v1147
    %v1152 = vtanh.pop %v1150
    %v1153 = vtanh.pop %v1151
    %v1154 = vsub.f32 1.0, %v1116
    %v1155 = vsub.f32 1.0, %v1131
    %1158 = vrot.lane.b32.xlu0 %v1152, 112
    %v1159 = vpop.permute.xlu0 %1158
    %1160 = vrot.lane.b32.xlu0 %v1153, 112
    %v1161 = vpop.permute.xlu0 %1160
    %v1164 = vmul.f32 %v1154, %v1159
    %v1165 = vmul.f32 %v1155, %v1161
    %v1166 = vmul.f32 %v1116, %v1046
    %v1167 = vmul.f32 %v1131, %v1047
    %v1168 = vadd.f32 %v1164, %v1166
    %v1169 = vadd.f32 %v1165, %v1167
    %v1170 = vld [vmem:[%s310] sm:$0xff]
    %1172 = vrot.lane.b32.xlu0 %v1168, 112
    %v1173 = vpop.permute.xlu0 %1172
    %v1175 = vadd.f32 %v1170, %v1173
    %1176 = vst.msk [vmem:[%s310] sm:$0xff] %vm45, %v1175
    %v1177 = vld [vmem:[#allocation4] sm:$0xff]
    %1179 = vrot.lane.b32.xlu0 %v1169, 112
    %v1180 = vpop.permute.xlu0 %1179
    %v1182 = vadd.f32 %v1177, %v1180
    %1183 = vst.msk [vmem:[#allocation4] sm:$0xff] %vm45, %v1182
    %v1184 = vadd.f32 %v1168, %v1169
    %1186 = vrot.lane.b32.xlu0 %v1184, 112
    %v1187 = vpop.permute.xlu0 %1186
    %1189 = vst.msk [vmem:[#allocation8] sm:$0xff] %vm45, %v1187
    %v1190 = vld [vmem:[#allocation4] sm:$0xff]
    %v1191 = vld [vmem:[#allocation4 + $0x8] sm:$0xff]
    %v1192 = vld [vmem:[#allocation4 + $0x10] sm:$0xff]
    %v1193 = vld [vmem:[#allocation4 + $0x18] sm:$0xff]
    %v1194 = vld [vmem:[#allocation4 + $0x20] sm:$0xff]
    %v1195 = vld [vmem:[#allocation4 + $0x28] sm:$0xff]
    %v1196 = vld [vmem:[#allocation4 + $0x30] sm:$0xff]
    %v1197 = vld [vmem:[#allocation4 + $0x38] sm:$0xff]
    %v1198 = vld [vmem:[#allocation5 + $0x50] sm:$0xff]
    %v1199 = vld [vmem:[#allocation5 + $0x58] sm:$0xff]
    %v1200 = vld [vmem:[#allocation5 + $0x60] sm:$0x1]
    %v1201 = vperm.slane %v1200, 0
    %v1203 = vsel %vm45, %v1190, 0
    %v1206 = vsel %vm45, %v1191, 0
    %v1209 = vsel %vm45, %v1192, 0
    %v1212 = vsel %vm45, %v1193, 0
    %v1215 = vsel %vm45, %v1194, 0
    %v1218 = vsel %vm45, %v1195, 0
    %v1221 = vsel %vm45, %v1196, 0
    %v1224 = vsel %vm45, %v1197, 0
    %1226 = vmatpush.msra.mxu0 0.0
    %1227 = vmatpush.msra.mxu0 0.0
    %1228 = vmatpush.msra.mxu0 0.0
    %1229 = vmatpush.msra.mxu0 0.0
    %1230 = vmatpush.msra.mxu0 0.0
    %1231 = vmatpush.msra.mxu0 0.0
    %1232 = vmatpush.msra.mxu0 0.0
    %1233 = vmatpush.msra.mxu0 0.0
    %1234 = vmatpush.msra.mxu0 0.0
    %1235 = vmatpush.msra.mxu0 0.0
    %1236 = vmatpush.msra.mxu0 0.0
    %1237 = vmatpush.msra.mxu0 0.0
    %1238 = vmatpush.msra.mxu0 0.0
    %1239 = vmatpush.msra.mxu0 0.0
    %1240 = vmatpush.msra.mxu0 %v1199
    %1241 = vmatpush.msra.mxu0 %v1198
    %1242 = vmatmul.f32.gmra.mxu0 %v1203
    %v1243 = vpop.f32.mrf.mxu0
    %v1244 = vadd.f32 %v1201, %v1243
    %1245 = vmatmul.f32.gmra.mxu0 %v1206
    %v1246 = vpop.f32.mrf.mxu0
    %v1247 = vadd.f32 %v1201, %v1246
    %1248 = vmatmul.f32.gmra.mxu0 %v1209
    %v1249 = vpop.f32.mrf.mxu0
    %v1250 = vadd.f32 %v1201, %v1249
    %1251 = vmatmul.f32.gmra.mxu0 %v1212
    %v1252 = vpop.f32.mrf.mxu0
    %v1253 = vadd.f32 %v1201, %v1252
    %1254 = vmatmul.f32.gmra.mxu0 %v1215
    %v1255 = vpop.f32.mrf.mxu0
    %v1256 = vadd.f32 %v1201, %v1255
    %1257 = vmatmul.f32.gmra.mxu0 %v1218
    %v1258 = vpop.f32.mrf.mxu0
    %v1259 = vadd.f32 %v1201, %v1258
    %1260 = vmatmul.f32.gmra.mxu0 %v1221
    %v1261 = vpop.f32.mrf.mxu0
    %v1262 = vadd.f32 %v1201, %v1261
    %1263 = vmatmul.f32.gmra.mxu0 %v1224
    %v1264 = vpop.f32.mrf.mxu0
    %v1265 = vadd.f32 %v1201, %v1264
    %1266 = vdwg.mxu0
    %v1267 = vtanh.pop %v1244
    %v1268 = vtanh.pop %v1247
    %v1269 = vtanh.pop %v1250
    %v1270 = vtanh.pop %v1253
    %v1271 = vtanh.pop %v1256
    %v1272 = vtanh.pop %v1259
    %v1273 = vtanh.pop %v1262
    %v1274 = vtanh.pop %v1265
    %v1275 = vld [vmem:[#allocation5 + $0x68] sm:$0x1]
    %v1276 = vperm.slane %v1275, 0
    %v1277 = vmul.f32 %v1267, %v1276
    %v1278 = vmul.f32 %v1268, %v1276
    %v1279 = vmul.f32 %v1269, %v1276
    %v1280 = vmul.f32 %v1270, %v1276
    %v1281 = vmul.f32 %v1271, %v1276
    %v1282 = vmul.f32 %v1272, %v1276
    %v1283 = vmul.f32 %v1273, %v1276
    %v1284 = vmul.f32 %v1274, %v1276
    %v1285 = vsel %vm45, %v1277, 0.0
    %1286 = vadd.xlane.f32.xlu0 %v1285
    %v1287 = vpop.xlane.xlu0 %1286
    %v1288 = vsel %vm45, %v1278, 0.0
    %1289 = vadd.xlane.f32.xlu0 %v1288
    %v1290 = vpop.xlane.xlu0 %1289
    %v1291 = vsel %vm45, %v1279, 0.0
    %1292 = vadd.xlane.f32.xlu0 %v1291
    %v1293 = vpop.xlane.xlu0 %1292
    %v1294 = vsel %vm45, %v1280, 0.0
    %1295 = vadd.xlane.f32.xlu0 %v1294
    %v1296 = vpop.xlane.xlu0 %1295
    %v1297 = vsel %vm45, %v1281, 0.0
    %1298 = vadd.xlane.f32.xlu0 %v1297
    %v1299 = vpop.xlane.xlu0 %1298
    %v1300 = vsel %vm45, %v1282, 0.0
    %1301 = vadd.xlane.f32.xlu0 %v1300
    %v1302 = vpop.xlane.xlu0 %1301
    %v1303 = vsel %vm45, %v1283, 0.0
    %1304 = vadd.xlane.f32.xlu0 %v1303
    %v1305 = vpop.xlane.xlu0 %1304
    %v1306 = vsel %vm45, %v1284, 0.0
    %1307 = vadd.xlane.f32.xlu0 %v1306
    %v1308 = vpop.xlane.xlu0 %1307
    %v1309 = vtanh.pop %v1287
    %v1310 = vtanh.pop %v1290
    %v1311 = vtanh.pop %v1293
    %v1312 = vtanh.pop %v1296
    %v1313 = vtanh.pop %v1299
    %v1314 = vtanh.pop %v1302
    %v1315 = vtanh.pop %v1305
    %v1316 = vtanh.pop %v1308
    %v1317 = vmul.f32 %v1309, 1.442695
    %v1318 = vpow.pop %v1317
    %v1319 = vmul.f32 %v1310, 1.442695
    %v1320 = vpow.pop %v1319
    %v1321 = vmul.f32 %v1311, 1.442695
    %v1322 = vpow.pop %v1321
    %v1323 = vmul.f32 %v1312, 1.442695
    %v1324 = vpow.pop %v1323
    %v1325 = vmul.f32 %v1313, 1.442695
    %v1326 = vpow.pop %v1325
    %v1327 = vmul.f32 %v1314, 1.442695
    %v1328 = vpow.pop %v1327
    %v1329 = vmul.f32 %v1315, 1.442695
    %v1330 = vpow.pop %v1329
    %v1331 = vmul.f32 %v1316, 1.442695
    %v1332 = vpow.pop %v1331
    %v1333 = vadd.f32 %v1318, %v1320
    %v1334 = vadd.f32 %v1333, %v1322
    %v1335 = vadd.f32 %v1334, %v1324
    %v1336 = vadd.f32 %v1335, %v1326
    %v1337 = vadd.f32 %v1336, %v1328
    %v1338 = vadd.f32 %v1337, %v1330
    %v1339 = vadd.f32 %v1338, %v1332
    %v1340 = vmul.f32 %v1190, %v1318
    %v1341 = vmul.f32 %v1191, %v1320
    %v1342 = vmul.f32 %v1192, %v1322
    %v1343 = vmul.f32 %v1193, %v1324
    %v1344 = vmul.f32 %v1194, %v1326
    %v1345 = vmul.f32 %v1195, %v1328
    %v1346 = vmul.f32 %v1196, %v1330
    %v1347 = vmul.f32 %v1197, %v1332
    %v1348 = vsel %vm45, %v1340, 0.0
    %v1349 = vsel %vm45, %v1341, 0.0
    %v1350 = vadd.f32 %v1348, %v1349
    %v1351 = vsel %vm45, %v1342, 0.0
    %v1352 = vadd.f32 %v1350, %v1351
    %v1353 = vsel %vm45, %v1343, 0.0
    %v1354 = vadd.f32 %v1352, %v1353
    %v1355 = vsel %vm45, %v1344, 0.0
    %v1356 = vadd.f32 %v1354, %v1355
    %v1357 = vsel %vm45, %v1345, 0.0
    %v1358 = vadd.f32 %v1356, %v1357
    %v1359 = vsel %vm45, %v1346, 0.0
    %v1360 = vadd.f32 %v1358, %v1359
    %v1361 = vsel %vm45, %v1347, 0.0
    %v1362 = vadd.f32 %v1360, %v1361
    %v1363 = vrcp.pop %v1339
    %v1364 = vmul.f32 %v1362, %v1363
    %v1365 = vld [vmem:[#allocation5 + $0x70] sm:$0xff]
    %v1366 = vld [vmem:[#allocation5 + $0x78] sm:$0xff]
    %v1367 = vld [vmem:[#allocation5 + $0x80] sm:$0x1]
    %v1368 = vperm.slane %v1367, 0
    %v1370 = vsel %vm45, %v1364, 0
    %1372 = vmatpush.msra.mxu0 0.0
    %1373 = vmatpush.msra.mxu0 0.0
    %1374 = vmatpush.msra.mxu0 0.0
    %1375 = vmatpush.msra.mxu0 0.0
    %1376 = vmatpush.msra.mxu0 0.0
    %1377 = vmatpush.msra.mxu0 0.0
    %1378 = vmatpush.msra.mxu0 0.0
    %1379 = vmatpush.msra.mxu0 0.0
    %1380 = vmatpush.msra.mxu0 0.0
    %1381 = vmatpush.msra.mxu0 0.0
    %1382 = vmatpush.msra.mxu0 0.0
    %1383 = vmatpush.msra.mxu0 0.0
    %1384 = vmatpush.msra.mxu0 0.0
    %1385 = vmatpush.msra.mxu0 0.0
    %1386 = vmatpush.msra.mxu0 %v1366
    %1387 = vmatpush.msra.mxu0 %v1365
    %1388 = vmatmul.f32.gmra.mxu0 %v1370
    %v1389 = vpop.f32.mrf.mxu0
    %v1390 = vadd.f32 %v1368, %v1389
    %1391 = vdwg.mxu0
    %vm1392 = vcmask 31744
    %1393 = vst.msk [vmem:[%s3] sm:$0xff] %vm1392, %v1390
    // Predicated region
    $region18: #{tpu_custom_call.1} parent=1 // pred_check
      _
    $region19: #{tpu_custom_call.1} parent=1 // pred_check_branch
      %1395 = sbr.rel (0) target = $region21
    $region20: #{tpu_custom_call.1} parent=1 // pred_region
      _
    $region21: #{tpu_custom_call.1} parent=1 // pred_fallthru
      _
    // Predicated region
    $region22: #{tpu_custom_call.1} parent=1 // pred_check
      _
    $region23: #{tpu_custom_call.1} parent=1 // pred_check_branch
      %1397 = sbr.rel (0) target = $region25
    $region24: #{tpu_custom_call.1} parent=1 // pred_region
      %1399 = vsyncadd [#allocation7], 0
      %s1401 = sshll.u32 [#allocation8], 4
      %s1402 = int_to_ptr.vmem [resolvable:$true] %s1401
      %s1403 = sshll.u32 %s4, 4
      %s1404 = int_to_ptr.hbm [resolvable:$true] %s1403
      %1406 = dma.vmem_to_hbm [thread:$0]  %s1402, 128, %s1404, [#allocation7]
    $region25: #{tpu_custom_call.1} parent=1 // pred_fallthru
      _
    // Predicated region
    $region26: #{tpu_custom_call.1} parent=1 // pred_check
      _
    $region27: #{tpu_custom_call.1} parent=1 // pred_check_branch
      %1408 = sbr.rel (0) target = $region29
    $region28: #{tpu_custom_call.1} parent=1 // pred_region
      _
    $region29: #{tpu_custom_call.1} parent=1 // pred_fallthru
      _
    // Predicated region
    $region30: #{tpu_custom_call.1} parent=1 // pred_check
      _
    $region31: #{tpu_custom_call.1} parent=1 // pred_check_branch
      %1410 = sbr.rel (0) target = $region33
    $region32: #{tpu_custom_call.1} parent=1 // pred_region
      %1412 = dma.done [#allocation7], 128
    $region33: #{tpu_custom_call.1} parent=1 // pred_fallthru
      _
    %1413 = vsyncpa [#allocation6], 1
    %1414 = vsyncpa [#allocation7], 1

</llo_original>
